<compile_context>
chip_gen: v7x
topology: tpu7x:2x2x1
jax: 0.10.0
libtpu: 0.0.40
codegen_flags: <defaults>
</compile_context>

<pallas_src>
import functools

import jax
import jax.numpy as jnp
from jax.experimental import pallas as pl
from jax.experimental.pallas import tpu as pltpu


LANE = 128
BN_EPS = 1e-5                      # nn.BatchNorm1d default
X_RESIDENT_BYTES = 2 * 1024 * 1024  # keep X fully resident in VMEM below this


def _round_up(x, m):
    return (x + m - 1) // m * m


def _pick_node_tiling(n):
    """Return (n_pad, tm, tk) with tm | n_pad, tk | n_pad.

    tk (reduction tile) is as large as divides cleanly (bigger DMAs -> closer
    to the HBM roofline); tm (parallel row tile) is large but shrunk until
    there are >= 4 row tiles so both v7x TensorCores stay busy.
    """
    if n <= 128:
        return 128, 128, 128
    if n <= 1024:
        n_pad = _round_up(n, 256)
    else:
        n_pad = _round_up(n, 512)

    if n > 1024 and n_pad % 1024 == 0:
        tk = 1024
    elif n_pad % 512 == 0:
        tk = 512
    else:
        tk = 256

    tm = 512
    while tm > 128 and (n_pad % tm != 0 or n_pad // tm < 4):
        tm //= 2
    return n_pad, tm, tk


# ---------------------------------------------------------------------------
# Fused layer kernel:  Y[i] = sum_k A_hat[i,k] @ (X[k] @ W)  + b'  [-> ReLU]
#   grid = (row tiles, K tiles); f32 accumulator; epilogue at k == last.
#   W (cin_p x cout_p bf16) and bias are resident; X is resident (full extent)
#   or streamed per K tile depending on size.
# ---------------------------------------------------------------------------
def _gcn_layer_kernel(a_ref, x_ref, w_ref, b_ref, o_ref, acc_ref,
                      *, apply_relu, x_resident, tk):
    k = pl.program_id(1)

    @pl.when(k == 0)
    def _():
        acc_ref[...] = jnp.zeros_like(acc_ref)

    if x_resident:
        row0 = pl.multiple_of(k * tk, tk)
        x_blk = x_ref[pl.ds(row0, tk), :]          # slice resident X
    else:
        x_blk = x_ref[...]                         # streamed (tk, cin_p) tile

    # Fused feature transform (bf16 MXU, f32 accumulate), then cast for the
    # aggregation matmul.
    xw = jnp.dot(x_blk, w_ref[...], preferred_element_type=jnp.float32)
    xw = xw.astype(jnp.bfloat16)

    # Aggregation: acc += A_hat[i, k] @ xw_tile
    acc_ref[...] += jnp.dot(a_ref[...], xw, preferred_element_type=jnp.float32)

    @pl.when(k == pl.num_programs(1) - 1)
    def _():
        out = acc_ref[...] + b_ref[...]            # (1, cout) broadcasts over rows
        if apply_relu:
            out = jnp.maximum(out, 0.0)
        o_ref[...] = out.astype(o_ref.dtype)


def gcn_layer(a_hat, x, w, b2d, *, tm, tk, apply_relu, out_dtype):
    n_pad = a_hat.shape[0]
    cin_p = x.shape[1]
    cout_p = w.shape[1]

    x_resident = n_pad * cin_p * 2 <= X_RESIDENT_BYTES
    if x_resident:
        # Full-extent block, constant index -> DMA'd once, stays in VMEM.
        x_spec = pl.BlockSpec((n_pad, cin_p), lambda i, k: (0, 0))
    else:
        x_spec = pl.BlockSpec((tk, cin_p), lambda i, k: (k, 0))

    kernel = functools.partial(
        _gcn_layer_kernel, apply_relu=apply_relu, x_resident=x_resident, tk=tk
    )
    return pl.pallas_call(
        kernel,
        out_shape=jax.ShapeDtypeStruct((n_pad, cout_p), out_dtype),
        grid=(n_pad // tm, n_pad // tk),
        in_specs=[
            pl.BlockSpec((tm, tk), lambda i, k: (i, k)),         # A_hat (bf16)
            x_spec,                                              # X     (bf16)
            pl.BlockSpec((cin_p, cout_p), lambda i, k: (0, 0)),  # W     (bf16, resident)
            pl.BlockSpec((1, cout_p), lambda i, k: (0, 0)),      # bias  (f32, resident)
        ],
        out_specs=pl.BlockSpec((tm, cout_p), lambda i, k: (i, 0)),
        scratch_shapes=[pltpu.VMEM((tm, cout_p), jnp.float32)],
        compiler_params=pltpu.CompilerParams(
            dimension_semantics=("parallel", "arbitrary")
        ),
    )(a_hat, x, w, b2d)


# ---------------------------------------------------------------------------
# Graph preprocessing (host/XLA side, done once and shared by all layers)
# ---------------------------------------------------------------------------
def build_normalized_adjacency(edge_index, num_nodes, n_pad):
    """Dense, padded, bf16 A_hat = D^-1/2 (A + I) D^-1/2 (PyG gcn_norm).

    edge_index[0] = source nodes, edge_index[1] = target nodes; messages flow
    source -> target, so A_hat[target, source] holds the edge weight.
    Duplicate edges are summed (matches PyG when the graph carries duplicates).
    """
    src = edge_index[0]
    dst = edge_index[1]
    loop = jnp.arange(num_nodes, dtype=src.dtype)
    src = jnp.concatenate([src, loop])
    dst = jnp.concatenate([dst, loop])
    w = jnp.ones(src.shape[0], jnp.float32)
    deg = jnp.zeros((num_nodes,), jnp.float32).at[dst].add(w)
    dinv = jnp.where(deg > 0, 1.0 / jnp.sqrt(deg), 0.0)
    norm = dinv[src] * dinv[dst]
    a_hat = jnp.zeros((num_nodes, num_nodes), jnp.float32).at[dst, src].add(norm)
    a_hat = jnp.pad(a_hat, ((0, n_pad - num_nodes), (0, n_pad - num_nodes)))
    return a_hat.astype(jnp.bfloat16)


def fold_bn(w, b, bn):
    """Fold eval-mode BatchNorm1d (gamma, beta, running_mean, running_var)
    into the preceding GCNConv weight/bias."""
    gamma, beta, mean, var = bn
    s = gamma / jnp.sqrt(var + BN_EPS)
    t = beta - mean * s
    return w * s[None, :], b * s + t


def _pad2(a, rows, cols):
    return jnp.pad(a, ((0, rows - a.shape[0]), (0, cols - a.shape[1])))


# ---------------------------------------------------------------------------
# Parameter init (mirrors GCNConv glorot weights + zero bias, BN buffers)
# ---------------------------------------------------------------------------
def glorot(key, shape):
    fan_in, fan_out = shape
    limit = jnp.sqrt(6.0 / (fan_in + fan_out))
    return jax.random.uniform(key, shape, jnp.float32, -limit, limit)


def init_gcn_params(key, in_channels, hidden_channels, out_channels,
                    num_layers=2, use_bn=True):
    dims = [in_channels] + [hidden_channels] * (num_layers - 1) + [out_channels]
    params, bn_params = [], []
    for li in range(num_layers):
        key, wk = jax.random.split(key)
        w = glorot(wk, (dims[li], dims[li + 1]))
        b = jnp.zeros((dims[li + 1],), jnp.float32)
        params.append((w, b))
        if use_bn and li < num_layers - 1:
            c = dims[li + 1]
            key, k1, k2, k3, k4 = jax.random.split(key, 5)
            gamma = 1.0 + 0.1 * jax.random.uniform(k1, (c,), jnp.float32)
            beta = 0.1 * jax.random.normal(k2, (c,), jnp.float32)
            mean = 0.1 * jax.random.normal(k3, (c,), jnp.float32)
            var = 1.0 + 0.5 * jax.random.uniform(k4, (c,), jnp.float32)
            bn_params.append((gamma, beta, mean, var))
    return params, (bn_params if use_bn else None)


# ---------------------------------------------------------------------------
# Forward pass (mirrors GCN.forward in eval mode)
# ---------------------------------------------------------------------------
def gcn_forward(node_feat, edge_index, params, bn_params=None):
    """GCN.forward in eval mode: dropout = identity, BN folded into W/b."""
    # TODO(synk): training-mode dropout / BN batch statistics not implemented
    # (forward is reproduced in inference mode).
    n, cin = node_feat.shape
    n_pad, tm, tk = _pick_node_tiling(n)
    a_hat = build_normalized_adjacency(edge_index, n, n_pad)

    cin_p = _round_up(cin, LANE)
    x = jnp.pad(node_feat, ((0, n_pad - n), (0, cin_p - cin))).astype(jnp.bfloat16)

    num_layers = len(params)
    for li, (w, b) in enumerate(params):
        is_last = li == num_layers - 1
        if (not is_last) and bn_params is not None:
            w, b = fold_bn(w, b, bn_params[li])
        cin_l, cout_l = w.shape
        cin_pl = _round_up(cin_l, LANE)
        cout_pl = _round_up(cout_l, LANE)
        w_p = _pad2(w, cin_pl, cout_pl).astype(jnp.bfloat16)
        b_p = jnp.pad(b, (0, cout_pl - cout_l)).reshape(1, cout_pl).astype(jnp.float32)

        x = gcn_layer(
            a_hat, x, w_p, b_p, tm=tm, tk=tk,
            apply_relu=not is_last,
            out_dtype=jnp.float32 if is_last else jnp.bfloat16,
        )

    out_channels = params[-1][0].shape[1]
    return x[:n, :out_channels]


if __name__ == "__main__":
    key = jax.random.PRNGKey(0)

    num_nodes = 300          # pads to 512 -> tm=128 (4 parallel row tiles), tk=512
    in_channels = 16
    hidden_channels = 64
    out_channels = 8
    num_layers = 3
    num_edges = 1500

    k_feat, k_src, k_dst, k_param = jax.random.split(key, 4)
    node_feat = jax.random.normal(k_feat, (num_nodes, in_channels), jnp.float32)
    edge_src = jax.random.randint(k_src, (num_edges,), 0, num_nodes, jnp.int32)
    edge_dst = jax.random.randint(k_dst, (num_edges,), 0, num_nodes, jnp.int32)
    edge_index = jnp.stack([edge_src, edge_dst], axis=0)

    params, bn_params = init_gcn_params(
        k_param, in_channels, hidden_channels, out_channels,
        num_layers=num_layers, use_bn=True,
    )

    out = gcn_forward(node_feat, edge_index, params, bn_params)
    out = jax.block_until_ready(out)
    assert out.shape == (num_nodes, out_channels)
    assert jnp.all(jnp.isfinite(out))
    print("KERNEL_OK")
</pallas_src>

<mosaic_0001>
module attributes {stable_mosaic.version = 11 : i64} {
  func.func @_gcn_layer_kernel(%arg0: i32, %arg1: i32, %arg2: memref<128x512xbf16, #tpu.memory_space<vmem>>, %arg3: memref<512x128xbf16, #tpu.memory_space<vmem>>, %arg4: memref<128x128xbf16, #tpu.memory_space<vmem>>, %arg5: memref<1x128xf32, #tpu.memory_space<vmem>>, %arg6: memref<128x128xbf16, #tpu.memory_space<vmem>>, %arg7: memref<128x128xf32, #tpu.memory_space<vmem>>) attributes {dimension_semantics = [#tpu.dimension_semantics<parallel>, #tpu.dimension_semantics<arbitrary>], iteration_bounds = array<i64: 4, 1>, scalar_prefetch = 0 : i64, scratch_operands = 1 : i64, tpu.core_type = #tpu.core_type<tc>, window_params = [{transform_indices = @transform_0, window_bounds = array<i64: 128, 512>}, {pipeline_mode = #tpu.pipeline_mode<synchronous>, transform_indices = @transform_1, window_bounds = array<i64: 512, 128>}, {pipeline_mode = #tpu.pipeline_mode<synchronous>, transform_indices = @transform_2, window_bounds = array<i64: 128, 128>}, {pipeline_mode = #tpu.pipeline_mode<synchronous>, transform_indices = @transform_3, window_bounds = array<i64: 1, 128>}, {transform_indices = @transform_4, window_bounds = array<i64: 128, 128>}]} {
    %c0_i32 = arith.constant 0 : i32
    %0 = arith.cmpi eq, %arg1, %c0_i32 : i32
    %1 = arith.extui %0 : i1 to i32
    %c0_i32_0 = arith.constant 0 : i32
    %2 = arith.cmpi ne, %1, %c0_i32_0 : i32
    scf.if %2 {
      %cst_12 = arith.constant 0.000000e+00 : f32
      %18 = vector.broadcast %cst_12 : f32 to vector<128x128xf32>
      %c0_13 = arith.constant 0 : index
      %c0_14 = arith.constant 0 : index
      %19 = vector.load %arg7[%c0_13, %c0_14] : memref<128x128xf32, #tpu.memory_space<vmem>>, vector<128x128xf32>
      tpu.vector_store %arg7[%c0_13, %c0_14], %18 {strides = array<i32>} : memref<128x128xf32, #tpu.memory_space<vmem>>, vector<128x128xf32>,
    } else {
    }
    %c512_i32 = arith.constant 512 : i32
    %3 = arith.muli %arg1, %c512_i32 : i32
    %4 = tpu.assume_multiple %3, 512 : i32
    %5 = arith.index_cast %4 : i32 to index
    %c0 = arith.constant 0 : index
    %6 = vector.load %arg3[%5, %c0] : memref<512x128xbf16, #tpu.memory_space<vmem>>, vector<512x128xbf16>
    %c0_1 = arith.constant 0 : index
    %c0_2 = arith.constant 0 : index
    %7 = vector.load %arg4[%c0_1, %c0_2] : memref<128x128xbf16, #tpu.memory_space<vmem>>, vector<128x128xbf16>
    %cst = arith.constant dense<0.000000e+00> : vector<512x128xf32>
    %8 = tpu.matmul %6, %7, %cst {dimension_numbers = #tpu.dot_dimension_numbers<[1], [0], [0], [1], [0, 0, 1, 1], [], []>} : vector<512x128xbf16>, vector<128x128xbf16>, vector<512x128xf32> -> vector<512x128xf32>
    %9 = arith.truncf %8 : vector<512x128xf32> to vector<512x128xbf16>
    %c0_3 = arith.constant 0 : index
    %c0_4 = arith.constant 0 : index
    %10 = vector.load %arg7[%c0_3, %c0_4] : memref<128x128xf32, #tpu.memory_space<vmem>>, vector<128x128xf32>
    %c0_5 = arith.constant 0 : index
    %c0_6 = arith.constant 0 : index
    %11 = vector.load %arg2[%c0_5, %c0_6] : memref<128x512xbf16, #tpu.memory_space<vmem>>, vector<128x512xbf16>
    %cst_7 = arith.constant dense<0.000000e+00> : vector<128x128xf32>
    %12 = tpu.matmul %11, %9, %cst_7 {dimension_numbers = #tpu.dot_dimension_numbers<[1], [0], [0], [1], [0, 0, 1, 1], [], []>} : vector<128x512xbf16>, vector<512x128xbf16>, vector<128x128xf32> -> vector<128x128xf32>
    %13 = arith.addf %10, %12 : vector<128x128xf32>
    %c0_8 = arith.constant 0 : index
    %c0_9 = arith.constant 0 : index
    %14 = vector.load %arg7[%c0_8, %c0_9] : memref<128x128xf32, #tpu.memory_space<vmem>>, vector<128x128xf32>
    tpu.vector_store %arg7[%c0_8, %c0_9], %13 {strides = array<i32>} : memref<128x128xf32, #tpu.memory_space<vmem>>, vector<128x128xf32>,
    %c0_i32_10 = arith.constant 0 : i32
    %15 = arith.cmpi eq, %arg1, %c0_i32_10 : i32
    %16 = arith.extui %15 : i1 to i32
    %c0_i32_11 = arith.constant 0 : i32
    %17 = arith.cmpi ne, %16, %c0_i32_11 : i32
    scf.if %17 {
      %c0_12 = arith.constant 0 : index
      %c0_13 = arith.constant 0 : index
      %18 = vector.load %arg7[%c0_12, %c0_13] : memref<128x128xf32, #tpu.memory_space<vmem>>, vector<128x128xf32>
      %c0_14 = arith.constant 0 : index
      %c0_15 = arith.constant 0 : index
      %19 = vector.load %arg5[%c0_14, %c0_15] : memref<1x128xf32, #tpu.memory_space<vmem>>, vector<1x128xf32>
      %20 = vector.broadcast %19 : vector<1x128xf32> to vector<128x128xf32>
      %21 = arith.addf %18, %20 : vector<128x128xf32>
      %cst_16 = arith.constant 0.000000e+00 : f32
      %22 = vector.broadcast %cst_16 : f32 to vector<128x128xf32>
      %23 = arith.maximumf %21, %22 : vector<128x128xf32>
      %24 = arith.truncf %23 : vector<128x128xf32> to vector<128x128xbf16>
      %c0_17 = arith.constant 0 : index
      %c0_18 = arith.constant 0 : index
      %25 = vector.load %arg6[%c0_17, %c0_18] : memref<128x128xbf16, #tpu.memory_space<vmem>>, vector<128x128xbf16>
      tpu.vector_store %arg6[%c0_17, %c0_18], %24 {strides = array<i32>} : memref<128x128xbf16, #tpu.memory_space<vmem>>, vector<128x128xbf16>,
    } else {
    }
    return
  }
  func.func @transform_0(%arg0: i32, %arg1: i32) -> (i32, i32) {
    %c0_i32 = arith.constant 0 : i32
    return %arg0, %arg1 : i32, i32
  }
  func.func @transform_1(%arg0: i32, %arg1: i32) -> (i32, i32) {
    %c0_i32 = arith.constant 0 : i32
    %c0_i32_0 = arith.constant 0 : i32
    %c0_i32_1 = arith.constant 0 : i32
    return %c0_i32, %c0_i32_0 : i32, i32
  }
  func.func @transform_2(%arg0: i32, %arg1: i32) -> (i32, i32) {
    %c0_i32 = arith.constant 0 : i32
    %c0_i32_0 = arith.constant 0 : i32
    %c0_i32_1 = arith.constant 0 : i32
    return %c0_i32, %c0_i32_0 : i32, i32
  }
  func.func @transform_3(%arg0: i32, %arg1: i32) -> (i32, i32) {
    %c0_i32 = arith.constant 0 : i32
    %c0_i32_0 = arith.constant 0 : i32
    %c0_i32_1 = arith.constant 0 : i32
    return %c0_i32, %c0_i32_0 : i32, i32
  }
  func.func @transform_4(%arg0: i32, %arg1: i32) -> (i32, i32) {
    %c0_i32 = arith.constant 0 : i32
    %c0_i32_0 = arith.constant 0 : i32
    return %arg0, %c0_i32 : i32, i32
  }
}

</mosaic_0001>

<llo_original>
// kernel: tpu_custom_call.1
$region0: #{tpu_custom_call.1}
  #allocation0 [shape = 'u32[]', space=smem, size = 0x4, offset = 0x4, fixed_abs, tag = 'smem constant byte address 0x4 - core index']
  #allocation1 [shape = 'u32[144,128]{1,0:T(1,128)}', space=vmem, size = 0x12000, scoped, tag = 'internal scratch']
  #allocation2 [shape = 'f32[128,128]{1,0:T(8,128)}', space=vmem, size = 0x10000, scoped, tag = 'scratch operand']
  %s0 = inlined_call_operand.hbm [shape: bf16[512,512], index: 0, kind: input, shape index: {}]
  %s1 = inlined_call_operand.hbm [shape: bf16[512,128], index: 1, kind: input, shape index: {}]
  %s2 = inlined_call_operand.hbm [shape: bf16[128,128], index: 2, kind: input, shape index: {}]
  %s3 = inlined_call_operand.vmem [shape: f32[1,128], index: 3, kind: input, shape index: {}]
  %s4 = inlined_call_operand.hbm [shape: bf16[512,128], index: 4, kind: output, shape index: {}]
  %s5 = sld [smem:[#allocation0]]
  $region69: #{tpu_custom_call.1} parent=0
    _
  %s7 = ssub.s32 1, %s5
  %s8 = scalar_select 0, %s7, %s5
  $region1: #{tpu_custom_call.1} parent=0
    #allocation3 [shape = 'u8[262144]{0}', space=vmem, size = 0x40000, scoped, tag = 'input window, operand 0']
    #allocation4 [shape = 's32[2]{0}', space=sflag, size = 0x8, scoped, tag = 'scoped memory for tpu_custom_call.1']
    #allocation5 [shape = 's32[2]{0}', space=sflag, size = 0x8, scoped, tag = 'scoped memory for tpu_custom_call.1']
    #allocation6 [shape = 'u8[131072]{0}', space=vmem, size = 0x20000, scoped, tag = 'input window, operand 1, single buffered']
    #allocation7 [shape = 's32[1]{0}', space=sflag, size = 0x4, scoped, tag = 'scoped memory for tpu_custom_call.1']
    #allocation8 [shape = 'u8[32768]{0}', space=vmem, size = 0x8000, scoped, tag = 'input window, operand 2, single buffered']
    #allocation9 [shape = 'u8[65536]{0}', space=vmem, size = 0x10000, scoped, tag = 'output window, operand 0']
    %9 = vsyncpa [#allocation4], 0
    %s10 = scalar_lea.sflag [#allocation4], 1
    %11 = vsyncpa %s10, 0
    %12 = vsyncpa [#allocation7], 0
    %13 = vsyncpa [#allocation5], 0
    %s14 = scalar_lea.sflag [#allocation5], 1
    %15 = vsyncpa %s14, 0
    loop: start=0, step=1, limit=6
    $region2: #{tpu_custom_call.1} parent=1 // loop_pre_header
      _
    $region3: #{tpu_custom_call.1} parent=1 // loop_header
      %s17 = sphi 0, %s21
      %p18 = scmp.ge.s32.totalorder %s17, 6
      %s24 = sphi 0, %s36
      %s25 = sphi 0, %s32
      %s26 = sphi 0, %s24
      %s27 = sphi 0, %s25
      %s28 = sphi 0, %s26
      %s29 = sphi 0, %s27
      %s41 = sphi 0, %s43
      %s44 = sphi 0, %s41
      %s45 = sphi 0, %s44
      %s61 = sphi 0, %s45
      %s65 = sphi 0, %s65
      %s67 = sphi 0, %s65
      %s68 = sphi 0, %s67
      %s82 = sphi 0, %s68
      %s86 = sphi 0, %s86
      %s88 = sphi 0, %s86
      %s89 = sphi 0, %s88
      %s103 = sphi 0, %s89
      %s107 = sphi 0, %s107
      %s109 = sphi 0, %s107
      %s110 = sphi 0, %s109
      %s124 = sphi 0, %s110
      %s130 = sphi 0, %s132
      %s133 = sphi 0, %s130
      %s134 = sphi 0, %s133
      %s150 = sphi 0, %s134
    $region4: #{tpu_custom_call.1} parent=1 // loop_header_branch
      %20 = sbr.rel (%p18) target = $region8
    $region5: #{tpu_custom_call.1} parent=1 // loop_body
      %s22 = ssub.s32 %s17, 1
      %s23 = ssub.s32 %s17, 2
      %s30 = sadd.s32 1, %s25
      %p31 = scmp.ge.s32.totalorder %s30, 1
      %s32 = scalar_select %p31, 0, %s30
      %s33 = sadd.s32 1, %s24
      %s34 = scalar_select %p31, %s33, %s24
      %p35 = scmp.ge.s32.totalorder %s34, 4
      %s36 = scalar_select %p35, 0, %s34
      %s37 = ssub.s32 %s24, %s36
      %s38 = ssub.s32 %s25, %s32
      %s39 = sor.u32 %s37, %s38
      %p40 = scmp.eq.s32.totalorder %s39, 0
      %s42 = sadd.s32 %s41, 1
      %s43 = scalar_select %p40, %s41, %s42
      %p46 = pneg %p40
      %p47 = scmp.eq.s32.totalorder %s17, 3
      %p48 = por %p46, %p47
      %p49 = scmp.ne.s32.totalorder %s41, %s44
      %p50 = scmp.eq.s32.totalorder %s17, 0
      %p51 = por %p49, %p50
      %p52 = scmp.ne.s32.totalorder %s41, %s44
      %p53 = scmp.eq.s32.totalorder %s22, 3
      %p54 = por %p52, %p53
      %p55 = scmp.ne.s32.totalorder %s44, %s45
      %p56 = scmp.eq.s32.totalorder %s22, 0
      %p57 = por %p55, %p56
      %p58 = scmp.ne.s32.totalorder %s44, %s45
      %p59 = scmp.eq.s32.totalorder %s23, 3
      %p60 = por %p58, %p59
      %p62 = scmp.ne.s32.totalorder %s45, %s61
      %p63 = scmp.eq.s32.totalorder %s23, 0
      %p64 = por %p62, %p63
      %s66 = sadd.s32 %s65, 1
      %p69 = scmp.eq.s32.totalorder %s17, 3
      %p70 = scmp.ne.s32.totalorder %s65, %s67
      %p71 = scmp.eq.s32.totalorder %s17, 0
      %p72 = por %p70, %p71
      %p73 = scmp.ne.s32.totalorder %s65, %s67
      %p74 = scmp.eq.s32.totalorder %s22, 3
      %p75 = por %p73, %p74
      %p76 = scmp.ne.s32.totalorder %s67, %s68
      %p77 = scmp.eq.s32.totalorder %s22, 0
      %p78 = por %p76, %p77
      %p79 = scmp.ne.s32.totalorder %s67, %s68
      %p80 = scmp.eq.s32.totalorder %s23, 3
      %p81 = por %p79, %p80
      %p83 = scmp.ne.s32.totalorder %s68, %s82
      %p84 = scmp.eq.s32.totalorder %s23, 0
      %p85 = por %p83, %p84
      %s87 = sadd.s32 %s86, 1
      %p90 = scmp.eq.s32.totalorder %s17, 3
      %p91 = scmp.ne.s32.totalorder %s86, %s88
      %p92 = scmp.eq.s32.totalorder %s17, 0
      %p93 = por %p91, %p92
      %p94 = scmp.ne.s32.totalorder %s86, %s88
      %p95 = scmp.eq.s32.totalorder %s22, 3
      %p96 = por %p94, %p95
      %p97 = scmp.ne.s32.totalorder %s88, %s89
      %p98 = scmp.eq.s32.totalorder %s22, 0
      %p99 = por %p97, %p98
      %p100 = scmp.ne.s32.totalorder %s88, %s89
      %p101 = scmp.eq.s32.totalorder %s23, 3
      %p102 = por %p100, %p101
      %p104 = scmp.ne.s32.totalorder %s89, %s103
      %p105 = scmp.eq.s32.totalorder %s23, 0
      %p106 = por %p104, %p105
      %s108 = sadd.s32 %s107, 1
      %p111 = scmp.eq.s32.totalorder %s17, 3
      %p112 = scmp.ne.s32.totalorder %s107, %s109
      %p113 = scmp.eq.s32.totalorder %s17, 0
      %p114 = por %p112, %p113
      %p115 = scmp.ne.s32.totalorder %s107, %s109
      %p116 = scmp.eq.s32.totalorder %s22, 3
      %p117 = por %p115, %p116
      %p118 = scmp.ne.s32.totalorder %s109, %s110
      %p119 = scmp.eq.s32.totalorder %s22, 0
      %p120 = por %p118, %p119
      %p121 = scmp.ne.s32.totalorder %s109, %s110
      %p122 = scmp.eq.s32.totalorder %s23, 3
      %p123 = por %p121, %p122
      %p125 = scmp.ne.s32.totalorder %s110, %s124
      %p126 = scmp.eq.s32.totalorder %s23, 0
      %p127 = por %p125, %p126
      %s128 = ssub.s32 %s24, %s36
      %p129 = scmp.eq.s32.totalorder %s128, 0
      %s131 = sadd.s32 %s130, 1
      %s132 = scalar_select %p129, %s130, %s131
      %p135 = pneg %p129
      %p136 = scmp.eq.s32.totalorder %s17, 3
      %p137 = por %p135, %p136
      %p138 = scmp.ne.s32.totalorder %s130, %s133
      %p139 = scmp.eq.s32.totalorder %s17, 0
      %p140 = por %p138, %p139
      %p141 = scmp.ne.s32.totalorder %s130, %s133
      %p142 = scmp.eq.s32.totalorder %s22, 3
      %p143 = por %p141, %p142
      %p144 = scmp.ne.s32.totalorder %s133, %s134
      %p145 = scmp.eq.s32.totalorder %s22, 0
      %p146 = por %p144, %p145
      %p147 = scmp.ne.s32.totalorder %s133, %s134
      %p148 = scmp.eq.s32.totalorder %s23, 3
      %p149 = por %p147, %p148
      %p151 = scmp.ne.s32.totalorder %s134, %s150
      %p152 = scmp.eq.s32.totalorder %s23, 0
      %p153 = por %p151, %p152
      %p154 = scmp.le.s32.totalorder 1, %s17
      %p155 = scmp.lt.s32.totalorder %s17, 5
      %p156 = pnand %p154, %p155
      %p157 = pneg %p156
      // Predicated region
      $region9: #{tpu_custom_call.1} parent=5 // pred_check
        _
      $region10: #{tpu_custom_call.1} parent=5 // pred_check_branch
        %159 = sbr.rel (%p156) target = $region12
      $region11: #{tpu_custom_call.1} parent=5 // pred_region
        %s160 = ssub.s32 %s17, 1
        // Predicated region
        $region13: #{tpu_custom_call.1} parent=11 // pred_check
          %p161 = pneg %p78
        $region14: #{tpu_custom_call.1} parent=11 // pred_check_branch
          %163 = sbr.rel (%p161) target = $region16
        $region15: #{tpu_custom_call.1} parent=11 // pred_region
          %s165 = ssub.s32 4096, 4096
          %166 = vsyncadd [#allocation7], %s165
          %s167 = sshll.u32 [#allocation6], 4
          %s168 = int_to_ptr.vmem [resolvable:$true] %s167
          %173 = dma.hbm_to_vmem [thread:$0]  %s1, 4096, %s168, [#allocation7], 64, 64, 4
        $region16: #{tpu_custom_call.1} parent=11 // pred_fallthru
          _
        // Predicated region
        $region17: #{tpu_custom_call.1} parent=11 // pred_check
          %p174 = pneg %p99
        $region18: #{tpu_custom_call.1} parent=11 // pred_check_branch
          %176 = sbr.rel (%p174) target = $region20
        $region19: #{tpu_custom_call.1} parent=11 // pred_region
          %s178 = ssub.s32 1024, 1024
          %179 = vsyncadd [#allocation7], %s178
          %s180 = sshll.u32 [#allocation8], 4
          %s181 = int_to_ptr.vmem [resolvable:$true] %s180
          %186 = dma.hbm_to_vmem [thread:$0]  %s2, 1024, %s181, [#allocation7], 64, 64, 4
        $region20: #{tpu_custom_call.1} parent=11 // pred_fallthru
          _
        // Predicated region
        $region21: #{tpu_custom_call.1} parent=11 // pred_check
          %p187 = pneg %p120
        $region22: #{tpu_custom_call.1} parent=11 // pred_check_branch
          %189 = sbr.rel (%p187) target = $region24
        $region23: #{tpu_custom_call.1} parent=11 // pred_region
          _
        $region24: #{tpu_custom_call.1} parent=11 // pred_fallthru
          _
      $region12: #{tpu_custom_call.1} parent=5 // pred_fallthru
        _
      %p190 = scmp.lt.s32.totalorder %s17, 4
      // Predicated region
      $region25: #{tpu_custom_call.1} parent=5 // pred_check
        %p191 = pneg %p190
      $region26: #{tpu_custom_call.1} parent=5 // pred_check_branch
        %193 = sbr.rel (%p191) target = $region28
      $region27: #{tpu_custom_call.1} parent=5 // pred_region
        // Predicated region
        $region29: #{tpu_custom_call.1} parent=27 // pred_check
          %p194 = pneg %p51
        $region30: #{tpu_custom_call.1} parent=27 // pred_check_branch
          %196 = sbr.rel (%p194) target = $region32
        $region31: #{tpu_custom_call.1} parent=27 // pred_region
          %s197 = sand.u32 %s41, 1
          %s198 = scalar_lea.sflag [#allocation4], %s197
          %s199 = sand.u32 %s41, 1
          %s200 = smul.addr %s199, 256
          %s201 = scalar_lea.vmem [#allocation3], %s200
          %s202 = smul.u32 16, %s24
          %s203 = smul.u32 4, %s25
          %s205 = ssub.s32 4096, 4096
          %206 = vsyncadd %s198, %s205
          %s207 = smul.addr %s202, 4
          %s208 = sadd.s32 %s203, %s207
          %s209 = smul.addr %s208, 64
          %s210 = scalar_lea.hbm %s0, %s209
          %s211 = sshll.u32 %s201, 4
          %s212 = int_to_ptr.vmem [resolvable:$true] %s211
          %217 = dma.hbm_to_vmem [thread:$0]  %s210, 4096, %s212, %s198, 256, 256, 16
        $region32: #{tpu_custom_call.1} parent=27 // pred_fallthru
          _
      $region28: #{tpu_custom_call.1} parent=5 // pred_fallthru
        _
      %p218 = scmp.le.s32.totalorder 1, %s17
      %p219 = scmp.lt.s32.totalorder %s17, 5
      %p220 = pnand %p218, %p219
      %p221 = pneg %p220
      // Predicated region
      $region33: #{tpu_custom_call.1} parent=5 // pred_check
        _
      $region34: #{tpu_custom_call.1} parent=5 // pred_check_branch
        %223 = sbr.rel (%p220) target = $region36
      $region35: #{tpu_custom_call.1} parent=5 // pred_region
        %s224 = ssub.s32 %s17, 1
        %s225 = sand.u32 %s44, 1
        %s226 = scalar_lea.sflag [#allocation4], %s225
        %s227 = sand.u32 %s44, 1
        %s228 = smul.addr %s227, 256
        %s229 = scalar_lea.vmem [#allocation3], %s228
        // Predicated region
        $region37: #{tpu_custom_call.1} parent=35 // pred_check
          %p230 = pneg %p57
        $region38: #{tpu_custom_call.1} parent=35 // pred_check_branch
          %232 = sbr.rel (%p230) target = $region40
        $region39: #{tpu_custom_call.1} parent=35 // pred_region
          %233 = dma.done %s226, 4096
        $region40: #{tpu_custom_call.1} parent=35 // pred_fallthru
          _
        // Predicated region
        $region41: #{tpu_custom_call.1} parent=35 // pred_check
          %p234 = pneg %p78
        $region42: #{tpu_custom_call.1} parent=35 // pred_check_branch
          %236 = sbr.rel (%p234) target = $region44
        $region43: #{tpu_custom_call.1} parent=35 // pred_region
          %237 = dma.done [#allocation7], 4096
        $region44: #{tpu_custom_call.1} parent=35 // pred_fallthru
          _
        // Predicated region
        $region45: #{tpu_custom_call.1} parent=35 // pred_check
          %p238 = pneg %p99
        $region46: #{tpu_custom_call.1} parent=35 // pred_check_branch
          %240 = sbr.rel (%p238) target = $region48
        $region47: #{tpu_custom_call.1} parent=35 // pred_region
          %241 = dma.done [#allocation7], 1024
        $region48: #{tpu_custom_call.1} parent=35 // pred_fallthru
          _
        %s242 = sand.u32 %s44, 1
        %s243 = scalar_lea.sflag [#allocation4], %s242
        %s244 = sand.u32 %s44, 1
        %s245 = smul.addr %s244, 256
        %s246 = scalar_lea.vmem [#allocation3], %s245
        %p247 = pneg %p57
        %p248 = pneg %p54
        %p249 = pneg %p78
        %p250 = pneg %p75
        %p251 = pneg %p99
        %p252 = pneg %p96
        %p253 = pneg %p120
        %p254 = pneg %p117
        %p255 = pneg %p146
        %p256 = pneg %p143
        %s257 = sand.u32 %s133, 1
        %s258 = scalar_lea.sflag [#allocation5], %s257
        %s259 = sand.u32 %s133, 1
        %s260 = smul.addr %s259, 64
        %s261 = scalar_lea.vmem [#allocation9], %s260
        %s262 = smul.u32 16, %s26
        %s263 = smul.u32 4, %s27
        %s264 = smul.u32 16, %s26
        %p266 = scmp.eq.s32.totalorder %s27, 0
        // Predicated region
        $region49: #{tpu_custom_call.1} parent=35 // pred_check
          %p267 = pneg %p266
        $region50: #{tpu_custom_call.1} parent=35 // pred_check_branch
          %269 = sbr.rel (%p267) target = $region52
        $region51: #{tpu_custom_call.1} parent=35 // pred_region
          %270 = vst [vmem:[#allocation2] sm:$0xff] 0.0
          %271 = vst [vmem:[#allocation2 + $0x8] sm:$0xff] 0.0
          %272 = vst [vmem:[#allocation2 + $0x10] sm:$0xff] 0.0
          %273 = vst [vmem:[#allocation2 + $0x18] sm:$0xff] 0.0
          %274 = vst [vmem:[#allocation2 + $0x20] sm:$0xff] 0.0
          %275 = vst [vmem:[#allocation2 + $0x28] sm:$0xff] 0.0
          %276 = vst [vmem:[#allocation2 + $0x30] sm:$0xff] 0.0
          %277 = vst [vmem:[#allocation2 + $0x38] sm:$0xff] 0.0
          %278 = vst [vmem:[#allocation2 + $0x40] sm:$0xff] 0.0
          %279 = vst [vmem:[#allocation2 + $0x48] sm:$0xff] 0.0
          %280 = vst [vmem:[#allocation2 + $0x50] sm:$0xff] 0.0
          %281 = vst [vmem:[#allocation2 + $0x58] sm:$0xff] 0.0
          %282 = vst [vmem:[#allocation2 + $0x60] sm:$0xff] 0.0
          %283 = vst [vmem:[#allocation2 + $0x68] sm:$0xff] 0.0
          %284 = vst [vmem:[#allocation2 + $0x70] sm:$0xff] 0.0
          %285 = vst [vmem:[#allocation2 + $0x78] sm:$0xff] 0.0
        $region52: #{tpu_custom_call.1} parent=35 // pred_fallthru
          _
        %s286 = smul.u32 %s27, 512
        %s287 = sshra.s32 %s286, 3
        %s288 = sand.u32 %s286, 7
        %s289 = smul.addr %s287, 4
        %s290 = scalar_lea.vmem [#allocation6], %s289
        %v291 = vld [vmem:[%s290] sm:$0xf]
        %v292 = vld [vmem:[%s290 + $0x4] sm:$0xf]
        %v293 = vld [vmem:[%s290 + $0x8] sm:$0xf]
        %v294 = vld [vmem:[%s290 + $0xc] sm:$0xf]
        %v295 = vld [vmem:[%s290 + $0x10] sm:$0xf]
        %v296 = vld [vmem:[%s290 + $0x14] sm:$0xf]
        %v297 = vld [vmem:[%s290 + $0x18] sm:$0xf]
        %v298 = vld [vmem:[%s290 + $0x1c] sm:$0xf]
        %v299 = vld [vmem:[%s290 + $0x20] sm:$0xf]
        %v300 = vld [vmem:[%s290 + $0x24] sm:$0xf]
        %v301 = vld [vmem:[%s290 + $0x28] sm:$0xf]
        %v302 = vld [vmem:[%s290 + $0x2c] sm:$0xf]
        %v303 = vld [vmem:[%s290 + $0x30] sm:$0xf]
        %v304 = vld [vmem:[%s290 + $0x34] sm:$0xf]
        %v305 = vld [vmem:[%s290 + $0x38] sm:$0xf]
        %v306 = vld [vmem:[%s290 + $0x3c] sm:$0xf]
        %v307 = vld [vmem:[%s290 + $0x40] sm:$0xf]
        %v308 = vld [vmem:[%s290 + $0x44] sm:$0xf]
        %v309 = vld [vmem:[%s290 + $0x48] sm:$0xf]
        %v310 = vld [vmem:[%s290 + $0x4c] sm:$0xf]
        %v311 = vld [vmem:[%s290 + $0x50] sm:$0xf]
        %v312 = vld [vmem:[%s290 + $0x54] sm:$0xf]
        %v313 = vld [vmem:[%s290 + $0x58] sm:$0xf]
        %v314 = vld [vmem:[%s290 + $0x5c] sm:$0xf]
        %v315 = vld [vmem:[%s290 + $0x60] sm:$0xf]
        %v316 = vld [vmem:[%s290 + $0x64] sm:$0xf]
        %v317 = vld [vmem:[%s290 + $0x68] sm:$0xf]
        %v318 = vld [vmem:[%s290 + $0x6c] sm:$0xf]
        %v319 = vld [vmem:[%s290 + $0x70] sm:$0xf]
        %v320 = vld [vmem:[%s290 + $0x74] sm:$0xf]
        %v321 = vld [vmem:[%s290 + $0x78] sm:$0xf]
        %v322 = vld [vmem:[%s290 + $0x7c] sm:$0xf]
        %v323 = vld [vmem:[%s290 + $0x80] sm:$0xf]
        %v324 = vld [vmem:[%s290 + $0x84] sm:$0xf]
        %v325 = vld [vmem:[%s290 + $0x88] sm:$0xf]
        %v326 = vld [vmem:[%s290 + $0x8c] sm:$0xf]
        %v327 = vld [vmem:[%s290 + $0x90] sm:$0xf]
        %v328 = vld [vmem:[%s290 + $0x94] sm:$0xf]
        %v329 = vld [vmem:[%s290 + $0x98] sm:$0xf]
        %v330 = vld [vmem:[%s290 + $0x9c] sm:$0xf]
        %v331 = vld [vmem:[%s290 + $0xa0] sm:$0xf]
        %v332 = vld [vmem:[%s290 + $0xa4] sm:$0xf]
        %v333 = vld [vmem:[%s290 + $0xa8] sm:$0xf]
        %v334 = vld [vmem:[%s290 + $0xac] sm:$0xf]
        %v335 = vld [vmem:[%s290 + $0xb0] sm:$0xf]
        %v336 = vld [vmem:[%s290 + $0xb4] sm:$0xf]
        %v337 = vld [vmem:[%s290 + $0xb8] sm:$0xf]
        %v338 = vld [vmem:[%s290 + $0xbc] sm:$0xf]
        %v339 = vld [vmem:[%s290 + $0xc0] sm:$0xf]
        %v340 = vld [vmem:[%s290 + $0xc4] sm:$0xf]
        %v341 = vld [vmem:[%s290 + $0xc8] sm:$0xf]
        %v342 = vld [vmem:[%s290 + $0xcc] sm:$0xf]
        %v343 = vld [vmem:[%s290 + $0xd0] sm:$0xf]
        %v344 = vld [vmem:[%s290 + $0xd4] sm:$0xf]
        %v345 = vld [vmem:[%s290 + $0xd8] sm:$0xf]
        %v346 = vld [vmem:[%s290 + $0xdc] sm:$0xf]
        %v347 = vld [vmem:[%s290 + $0xe0] sm:$0xf]
        %v348 = vld [vmem:[%s290 + $0xe4] sm:$0xf]
        %v349 = vld [vmem:[%s290 + $0xe8] sm:$0xf]
        %v350 = vld [vmem:[%s290 + $0xec] sm:$0xf]
        %v351 = vld [vmem:[%s290 + $0xf0] sm:$0xf]
        %v352 = vld [vmem:[%s290 + $0xf4] sm:$0xf]
        %v353 = vld [vmem:[%s290 + $0xf8] sm:$0xf]
        %v354 = vld [vmem:[%s290 + $0xfc] sm:$0xf]
        %v355 = vld [vmem:[#allocation8] sm:$0xf]
        %v356 = vld [vmem:[#allocation8 + $0x4] sm:$0xf]
        %v357 = vld [vmem:[#allocation8 + $0x8] sm:$0xf]
        %v358 = vld [vmem:[#allocation8 + $0xc] sm:$0xf]
        %v359 = vld [vmem:[#allocation8 + $0x10] sm:$0xf]
        %v360 = vld [vmem:[#allocation8 + $0x14] sm:$0xf]
        %v361 = vld [vmem:[#allocation8 + $0x18] sm:$0xf]
        %v362 = vld [vmem:[#allocation8 + $0x1c] sm:$0xf]
        %v363 = vld [vmem:[#allocation8 + $0x20] sm:$0xf]
        %v364 = vld [vmem:[#allocation8 + $0x24] sm:$0xf]
        %v365 = vld [vmem:[#allocation8 + $0x28] sm:$0xf]
        %v366 = vld [vmem:[#allocation8 + $0x2c] sm:$0xf]
        %v367 = vld [vmem:[#allocation8 + $0x30] sm:$0xf]
        %v368 = vld [vmem:[#allocation8 + $0x34] sm:$0xf]
        %v369 = vld [vmem:[#allocation8 + $0x38] sm:$0xf]
        %v370 = vld [vmem:[#allocation8 + $0x3c] sm:$0xf]
        %v435 = vunpack.c.l.b16 %v291
        %v436 = vunpack.c.l.b16 %v292
        %v437 = vunpack.c.l.b16 %v293
        %v438 = vunpack.c.l.b16 %v294
        %v439 = vunpack.c.l.b16 %v295
        %v440 = vunpack.c.l.b16 %v296
        %v441 = vunpack.c.l.b16 %v297
        %v442 = vunpack.c.l.b16 %v298
        %v443 = vunpack.c.l.b16 %v299
        %v444 = vunpack.c.l.b16 %v300
        %v445 = vunpack.c.l.b16 %v301
        %v446 = vunpack.c.l.b16 %v302
        %v447 = vunpack.c.l.b16 %v303
        %v448 = vunpack.c.l.b16 %v304
        %v449 = vunpack.c.l.b16 %v305
        %v450 = vunpack.c.l.b16 %v306
        %v451 = vunpack.c.l.b16 %v307
        %v452 = vunpack.c.l.b16 %v308
        %v453 = vunpack.c.l.b16 %v309
        %v454 = vunpack.c.l.b16 %v310
        %v455 = vunpack.c.l.b16 %v311
        %v456 = vunpack.c.l.b16 %v312
        %v457 = vunpack.c.l.b16 %v313
        %v458 = vunpack.c.l.b16 %v314
        %v459 = vunpack.c.l.b16 %v315
        %v460 = vunpack.c.l.b16 %v316
        %v461 = vunpack.c.l.b16 %v317
        %v462 = vunpack.c.l.b16 %v318
        %v463 = vunpack.c.l.b16 %v319
        %v464 = vunpack.c.l.b16 %v320
        %v465 = vunpack.c.l.b16 %v321
        %v466 = vunpack.c.l.b16 %v322
        %v467 = vunpack.c.l.b16 %v323
        %v468 = vunpack.c.l.b16 %v324
        %v469 = vunpack.c.l.b16 %v325
        %v470 = vunpack.c.l.b16 %v326
        %v471 = vunpack.c.l.b16 %v327
        %v472 = vunpack.c.l.b16 %v328
        %v473 = vunpack.c.l.b16 %v329
        %v474 = vunpack.c.l.b16 %v330
        %v475 = vunpack.c.l.b16 %v331
        %v476 = vunpack.c.l.b16 %v332
        %v477 = vunpack.c.l.b16 %v333
        %v478 = vunpack.c.l.b16 %v334
        %v479 = vunpack.c.l.b16 %v335
        %v480 = vunpack.c.l.b16 %v336
        %v481 = vunpack.c.l.b16 %v337
        %v482 = vunpack.c.l.b16 %v338
        %v483 = vunpack.c.l.b16 %v339
        %v484 = vunpack.c.l.b16 %v340
        %v485 = vunpack.c.l.b16 %v341
        %v486 = vunpack.c.l.b16 %v342
        %v487 = vunpack.c.l.b16 %v343
        %v488 = vunpack.c.l.b16 %v344
        %v489 = vunpack.c.l.b16 %v345
        %v490 = vunpack.c.l.b16 %v346
        %v491 = vunpack.c.l.b16 %v347
        %v492 = vunpack.c.l.b16 %v348
        %v493 = vunpack.c.l.b16 %v349
        %v494 = vunpack.c.l.b16 %v350
        %v495 = vunpack.c.l.b16 %v351
        %v496 = vunpack.c.l.b16 %v352
        %v497 = vunpack.c.l.b16 %v353
        %v498 = vunpack.c.l.b16 %v354
        %v499 = vpack.c.b16 %v436, %v435
        %v500 = vpack.c.b16 %v438, %v437
        %v501 = vpack.c.b16 %v440, %v439
        %v502 = vpack.c.b16 %v442, %v441
        %v503 = vpack.c.b16 %v444, %v443
        %v504 = vpack.c.b16 %v446, %v445
        %v505 = vpack.c.b16 %v448, %v447
        %v506 = vpack.c.b16 %v450, %v449
        %v507 = vpack.c.b16 %v452, %v451
        %v508 = vpack.c.b16 %v454, %v453
        %v509 = vpack.c.b16 %v456, %v455
        %v510 = vpack.c.b16 %v458, %v457
        %v511 = vpack.c.b16 %v460, %v459
        %v512 = vpack.c.b16 %v462, %v461
        %v513 = vpack.c.b16 %v464, %v463
        %v514 = vpack.c.b16 %v466, %v465
        %v515 = vpack.c.b16 %v468, %v467
        %v516 = vpack.c.b16 %v470, %v469
        %v517 = vpack.c.b16 %v472, %v471
        %v518 = vpack.c.b16 %v474, %v473
        %v519 = vpack.c.b16 %v476, %v475
        %v520 = vpack.c.b16 %v478, %v477
        %v521 = vpack.c.b16 %v480, %v479
        %v522 = vpack.c.b16 %v482, %v481
        %v523 = vpack.c.b16 %v484, %v483
        %v524 = vpack.c.b16 %v486, %v485
        %v525 = vpack.c.b16 %v488, %v487
        %v526 = vpack.c.b16 %v490, %v489
        %v527 = vpack.c.b16 %v492, %v491
        %v528 = vpack.c.b16 %v494, %v493
        %v529 = vpack.c.b16 %v496, %v495
        %v530 = vpack.c.b16 %v498, %v497
        %v579 = vunpack.c.l.b16 %v355
        %v580 = vunpack.c.l.b16 %v356
        %v581 = vunpack.c.l.b16 %v357
        %v582 = vunpack.c.l.b16 %v358
        %v583 = vunpack.c.l.b16 %v359
        %v584 = vunpack.c.l.b16 %v360
        %v585 = vunpack.c.l.b16 %v361
        %v586 = vunpack.c.l.b16 %v362
        %v587 = vunpack.c.l.b16 %v363
        %v588 = vunpack.c.l.b16 %v364
        %v589 = vunpack.c.l.b16 %v365
        %v590 = vunpack.c.l.b16 %v366
        %v591 = vunpack.c.l.b16 %v367
        %v592 = vunpack.c.l.b16 %v368
        %v593 = vunpack.c.l.b16 %v369
        %v594 = vunpack.c.l.b16 %v370
        %v595 = vpack.c.b16 %v580, %v579
        %v596 = vpack.c.b16 %v582, %v581
        %v597 = vpack.c.b16 %v584, %v583
        %v598 = vpack.c.b16 %v586, %v585
        %v599 = vpack.c.b16 %v588, %v587
        %v600 = vpack.c.b16 %v590, %v589
        %v601 = vpack.c.b16 %v592, %v591
        %v602 = vpack.c.b16 %v594, %v593
        %611 = vmatprep.subr.bf16.mxu0 0
        %612 = vmatpush1.bf16.msra.mxu0 %v595
        %613 = vmatprep.subr.bf16.mxu0 0
        %614 = vmatpush1.bf16.msra.mxu0 %v596
        %615 = vmatprep.subr.bf16.mxu0 0
        %616 = vmatpush1.bf16.msra.mxu0 %v597
        %617 = vmatprep.subr.bf16.mxu0 0
        %618 = vmatpush1.bf16.msra.mxu0 %v598
        %619 = vmatprep.subr.bf16.mxu0 0
        %620 = vmatpush1.bf16.msra.mxu0 %v599
        %621 = vmatprep.subr.bf16.mxu0 0
        %622 = vmatpush1.bf16.msra.mxu0 %v600
        %623 = vmatprep.subr.bf16.mxu0 0
        %624 = vmatpush1.bf16.msra.mxu0 %v601
        %625 = vmatprep.subr.bf16.mxu0 0
        %626 = vmatpush1.bf16.msra.mxu0 %v602
        %627 = vmatprep.subr.bf16.mxu0 0
        %628 = vmatpush1.bf16.msra.mxu0 0
        %629 = vmatprep.subr.bf16.mxu0 0
        %630 = vmatpush1.bf16.msra.mxu0 0
        %631 = vmatprep.subr.bf16.mxu0 0
        %632 = vmatpush1.bf16.msra.mxu0 0
        %633 = vmatprep.subr.bf16.mxu0 0
        %634 = vmatpush1.bf16.msra.mxu0 0
        %635 = vmatprep.subr.bf16.mxu0 0
        %636 = vmatpush1.bf16.msra.mxu0 0
        %637 = vmatprep.subr.bf16.mxu0 0
        %638 = vmatpush1.bf16.msra.mxu0 0
        %639 = vmatprep.subr.bf16.mxu0 0
        %640 = vmatpush1.bf16.msra.mxu0 0
        %641 = vmatprep.subr.bf16.mxu0 0
        %642 = vmatpush1.bf16.msra.mxu0 0
        %643 = vmatprep.mubr.bf16.mxu0 0
        %644 = vmatmul.mubr.bf16.gmra.mrb[0].mxu0 %v499
        %v645 = vpop.f32.mrb[0].mxu0
        %v646 = vadd.f32 0.0, %v645
        %v647 = vpop.f32.mrb[0].mxu0
        %v648 = vpop.f32.mrb[0].mxu0
        %v649 = vadd.f32 0.0, %v648
        %v650 = vpop.f32.mrb[0].mxu0
        %651 = vmatprep.mubr.bf16.mxu0 0
        %652 = vmatmul.mubr.bf16.gmra.mrb[0].mxu0 %v500
        %v653 = vpop.f32.mrb[0].mxu0
        %v654 = vadd.f32 0.0, %v653
        %v655 = vpop.f32.mrb[0].mxu0
        %v656 = vpop.f32.mrb[0].mxu0
        %v657 = vadd.f32 0.0, %v656
        %v658 = vpop.f32.mrb[0].mxu0
        %659 = vmatprep.mubr.bf16.mxu0 0
        %660 = vmatmul.mubr.bf16.gmra.mrb[0].mxu0 %v501
        %v661 = vpop.f32.mrb[0].mxu0
        %v662 = vadd.f32 0.0, %v661
        %v663 = vpop.f32.mrb[0].mxu0
        %v664 = vpop.f32.mrb[0].mxu0
        %v665 = vadd.f32 0.0, %v664
        %v666 = vpop.f32.mrb[0].mxu0
        %667 = vmatprep.mubr.bf16.mxu0 0
        %668 = vmatmul.mubr.bf16.gmra.mrb[0].mxu0 %v502
        %v669 = vpop.f32.mrb[0].mxu0
        %v670 = vadd.f32 0.0, %v669
        %v671 = vpop.f32.mrb[0].mxu0
        %v672 = vpop.f32.mrb[0].mxu0
        %v673 = vadd.f32 0.0, %v672
        %v674 = vpop.f32.mrb[0].mxu0
        %675 = vmatprep.mubr.bf16.mxu0 0
        %676 = vmatmul.mubr.bf16.gmra.mrb[0].mxu0 %v503
        %v677 = vpop.f32.mrb[0].mxu0
        %v678 = vadd.f32 0.0, %v677
        %v679 = vpop.f32.mrb[0].mxu0
        %v680 = vpop.f32.mrb[0].mxu0
        %v681 = vadd.f32 0.0, %v680
        %v682 = vpop.f32.mrb[0].mxu0
        %683 = vmatprep.mubr.bf16.mxu0 0
        %684 = vmatmul.mubr.bf16.gmra.mrb[0].mxu0 %v504
        %v685 = vpop.f32.mrb[0].mxu0
        %v686 = vadd.f32 0.0, %v685
        %v687 = vpop.f32.mrb[0].mxu0
        %v688 = vpop.f32.mrb[0].mxu0
        %v689 = vadd.f32 0.0, %v688
        %v690 = vpop.f32.mrb[0].mxu0
        %691 = vmatprep.mubr.bf16.mxu0 0
        %692 = vmatmul.mubr.bf16.gmra.mrb[0].mxu0 %v505
        %v693 = vpop.f32.mrb[0].mxu0
        %v694 = vadd.f32 0.0, %v693
        %v695 = vpop.f32.mrb[0].mxu0
        %v696 = vpop.f32.mrb[0].mxu0
        %v697 = vadd.f32 0.0, %v696
        %v698 = vpop.f32.mrb[0].mxu0
        %699 = vmatprep.mubr.bf16.mxu0 0
        %700 = vmatmul.mubr.bf16.gmra.mrb[0].mxu0 %v506
        %v701 = vpop.f32.mrb[0].mxu0
        %v702 = vadd.f32 0.0, %v701
        %v703 = vpop.f32.mrb[0].mxu0
        %v704 = vpop.f32.mrb[0].mxu0
        %v705 = vadd.f32 0.0, %v704
        %v706 = vpop.f32.mrb[0].mxu0
        %707 = vmatprep.mubr.bf16.mxu0 0
        %708 = vmatmul.mubr.bf16.gmra.mrb[0].mxu0 %v507
        %v709 = vpop.f32.mrb[0].mxu0
        %v710 = vadd.f32 0.0, %v709
        %v711 = vpop.f32.mrb[0].mxu0
        %v712 = vpop.f32.mrb[0].mxu0
        %v713 = vadd.f32 0.0, %v712
        %v714 = vpop.f32.mrb[0].mxu0
        %715 = vmatprep.mubr.bf16.mxu0 0
        %716 = vmatmul.mubr.bf16.gmra.mrb[0].mxu0 %v508
        %v717 = vpop.f32.mrb[0].mxu0
        %v718 = vadd.f32 0.0, %v717
        %v719 = vpop.f32.mrb[0].mxu0
        %v720 = vpop.f32.mrb[0].mxu0
        %v721 = vadd.f32 0.0, %v720
        %v722 = vpop.f32.mrb[0].mxu0
        %723 = vmatprep.mubr.bf16.mxu0 0
        %724 = vmatmul.mubr.bf16.gmra.mrb[0].mxu0 %v509
        %v725 = vpop.f32.mrb[0].mxu0
        %v726 = vadd.f32 0.0, %v725
        %v727 = vpop.f32.mrb[0].mxu0
        %v728 = vpop.f32.mrb[0].mxu0
        %v729 = vadd.f32 0.0, %v728
        %v730 = vpop.f32.mrb[0].mxu0
        %731 = vmatprep.mubr.bf16.mxu0 0
        %732 = vmatmul.mubr.bf16.gmra.mrb[0].mxu0 %v510
        %v733 = vpop.f32.mrb[0].mxu0
        %v734 = vadd.f32 0.0, %v733
        %v735 = vpop.f32.mrb[0].mxu0
        %v736 = vpop.f32.mrb[0].mxu0
        %v737 = vadd.f32 0.0, %v736
        %v738 = vpop.f32.mrb[0].mxu0
        %739 = vmatprep.mubr.bf16.mxu0 0
        %740 = vmatmul.mubr.bf16.gmra.mrb[0].mxu0 %v511
        %v741 = vpop.f32.mrb[0].mxu0
        %v742 = vadd.f32 0.0, %v741
        %v743 = vpop.f32.mrb[0].mxu0
        %v744 = vpop.f32.mrb[0].mxu0
        %v745 = vadd.f32 0.0, %v744
        %v746 = vpop.f32.mrb[0].mxu0
        %747 = vmatprep.mubr.bf16.mxu0 0
        %748 = vmatmul.mubr.bf16.gmra.mrb[0].mxu0 %v512
        %v749 = vpop.f32.mrb[0].mxu0
        %v750 = vadd.f32 0.0, %v749
        %v751 = vpop.f32.mrb[0].mxu0
        %v752 = vpop.f32.mrb[0].mxu0
        %v753 = vadd.f32 0.0, %v752
        %v754 = vpop.f32.mrb[0].mxu0
        %755 = vmatprep.mubr.bf16.mxu0 0
        %756 = vmatmul.mubr.bf16.gmra.mrb[0].mxu0 %v513
        %v757 = vpop.f32.mrb[0].mxu0
        %v758 = vadd.f32 0.0, %v757
        %v759 = vpop.f32.mrb[0].mxu0
        %v760 = vpop.f32.mrb[0].mxu0
        %v761 = vadd.f32 0.0, %v760
        %v762 = vpop.f32.mrb[0].mxu0
        %763 = vmatprep.mubr.bf16.mxu0 0
        %764 = vmatmul.mubr.bf16.gmra.mrb[0].mxu0 %v514
        %v765 = vpop.f32.mrb[0].mxu0
        %v766 = vadd.f32 0.0, %v765
        %v767 = vpop.f32.mrb[0].mxu0
        %v768 = vpop.f32.mrb[0].mxu0
        %v769 = vadd.f32 0.0, %v768
        %v770 = vpop.f32.mrb[0].mxu0
        %771 = vmatprep.mubr.bf16.mxu0 0
        %772 = vmatmul.mubr.bf16.gmra.mrb[0].mxu0 %v515
        %v773 = vpop.f32.mrb[0].mxu0
        %v774 = vadd.f32 0.0, %v773
        %v775 = vpop.f32.mrb[0].mxu0
        %v776 = vpop.f32.mrb[0].mxu0
        %v777 = vadd.f32 0.0, %v776
        %v778 = vpop.f32.mrb[0].mxu0
        %779 = vmatprep.mubr.bf16.mxu0 0
        %780 = vmatmul.mubr.bf16.gmra.mrb[0].mxu0 %v516
        %v781 = vpop.f32.mrb[0].mxu0
        %v782 = vadd.f32 0.0, %v781
        %v783 = vpop.f32.mrb[0].mxu0
        %v784 = vpop.f32.mrb[0].mxu0
        %v785 = vadd.f32 0.0, %v784
        %v786 = vpop.f32.mrb[0].mxu0
        %787 = vmatprep.mubr.bf16.mxu0 0
        %788 = vmatmul.mubr.bf16.gmra.mrb[0].mxu0 %v517
        %v789 = vpop.f32.mrb[0].mxu0
        %v790 = vadd.f32 0.0, %v789
        %v791 = vpop.f32.mrb[0].mxu0
        %v792 = vpop.f32.mrb[0].mxu0
        %v793 = vadd.f32 0.0, %v792
        %v794 = vpop.f32.mrb[0].mxu0
        %795 = vmatprep.mubr.bf16.mxu0 0
        %796 = vmatmul.mubr.bf16.gmra.mrb[0].mxu0 %v518
        %v797 = vpop.f32.mrb[0].mxu0
        %v798 = vadd.f32 0.0, %v797
        %v799 = vpop.f32.mrb[0].mxu0
        %v800 = vpop.f32.mrb[0].mxu0
        %v801 = vadd.f32 0.0, %v800
        %v802 = vpop.f32.mrb[0].mxu0
        %803 = vmatprep.mubr.bf16.mxu0 0
        %804 = vmatmul.mubr.bf16.gmra.mrb[0].mxu0 %v519
        %v805 = vpop.f32.mrb[0].mxu0
        %v806 = vadd.f32 0.0, %v805
        %v807 = vpop.f32.mrb[0].mxu0
        %v808 = vpop.f32.mrb[0].mxu0
        %v809 = vadd.f32 0.0, %v808
        %v810 = vpop.f32.mrb[0].mxu0
        %811 = vmatprep.mubr.bf16.mxu0 0
        %812 = vmatmul.mubr.bf16.gmra.mrb[0].mxu0 %v520
        %v813 = vpop.f32.mrb[0].mxu0
        %v814 = vadd.f32 0.0, %v813
        %v815 = vpop.f32.mrb[0].mxu0
        %v816 = vpop.f32.mrb[0].mxu0
        %v817 = vadd.f32 0.0, %v816
        %v818 = vpop.f32.mrb[0].mxu0
        %819 = vmatprep.mubr.bf16.mxu0 0
        %820 = vmatmul.mubr.bf16.gmra.mrb[0].mxu0 %v521
        %v821 = vpop.f32.mrb[0].mxu0
        %v822 = vadd.f32 0.0, %v821
        %v823 = vpop.f32.mrb[0].mxu0
        %v824 = vpop.f32.mrb[0].mxu0
        %v825 = vadd.f32 0.0, %v824
        %v826 = vpop.f32.mrb[0].mxu0
        %827 = vmatprep.mubr.bf16.mxu0 0
        %828 = vmatmul.mubr.bf16.gmra.mrb[0].mxu0 %v522
        %v829 = vpop.f32.mrb[0].mxu0
        %v830 = vadd.f32 0.0, %v829
        %v831 = vpop.f32.mrb[0].mxu0
        %v832 = vpop.f32.mrb[0].mxu0
        %v833 = vadd.f32 0.0, %v832
        %v834 = vpop.f32.mrb[0].mxu0
        %835 = vmatprep.mubr.bf16.mxu0 0
        %836 = vmatmul.mubr.bf16.gmra.mrb[0].mxu0 %v523
        %v837 = vpop.f32.mrb[0].mxu0
        %v838 = vadd.f32 0.0, %v837
        %v839 = vpop.f32.mrb[0].mxu0
        %v840 = vpop.f32.mrb[0].mxu0
        %v841 = vadd.f32 0.0, %v840
        %v842 = vpop.f32.mrb[0].mxu0
        %843 = vmatprep.mubr.bf16.mxu0 0
        %844 = vmatmul.mubr.bf16.gmra.mrb[0].mxu0 %v524
        %v845 = vpop.f32.mrb[0].mxu0
        %v846 = vadd.f32 0.0, %v845
        %v847 = vpop.f32.mrb[0].mxu0
        %v848 = vpop.f32.mrb[0].mxu0
        %v849 = vadd.f32 0.0, %v848
        %v850 = vpop.f32.mrb[0].mxu0
        %851 = vmatprep.mubr.bf16.mxu0 0
        %852 = vmatmul.mubr.bf16.gmra.mrb[0].mxu0 %v525
        %v853 = vpop.f32.mrb[0].mxu0
        %v854 = vadd.f32 0.0, %v853
        %v855 = vpop.f32.mrb[0].mxu0
        %v856 = vpop.f32.mrb[0].mxu0
        %v857 = vadd.f32 0.0, %v856
        %v858 = vpop.f32.mrb[0].mxu0
        %859 = vmatprep.mubr.bf16.mxu0 0
        %860 = vmatmul.mubr.bf16.gmra.mrb[0].mxu0 %v526
        %v861 = vpop.f32.mrb[0].mxu0
        %v862 = vadd.f32 0.0, %v861
        %v863 = vpop.f32.mrb[0].mxu0
        %v864 = vpop.f32.mrb[0].mxu0
        %v865 = vadd.f32 0.0, %v864
        %v866 = vpop.f32.mrb[0].mxu0
        %867 = vmatprep.mubr.bf16.mxu0 0
        %868 = vmatmul.mubr.bf16.gmra.mrb[0].mxu0 %v527
        %v869 = vpop.f32.mrb[0].mxu0
        %v870 = vadd.f32 0.0, %v869
        %v871 = vpop.f32.mrb[0].mxu0
        %v872 = vpop.f32.mrb[0].mxu0
        %v873 = vadd.f32 0.0, %v872
        %v874 = vpop.f32.mrb[0].mxu0
        %875 = vmatprep.mubr.bf16.mxu0 0
        %876 = vmatmul.mubr.bf16.gmra.mrb[0].mxu0 %v528
        %v877 = vpop.f32.mrb[0].mxu0
        %v878 = vadd.f32 0.0, %v877
        %v879 = vpop.f32.mrb[0].mxu0
        %v880 = vpop.f32.mrb[0].mxu0
        %v881 = vadd.f32 0.0, %v880
        %v882 = vpop.f32.mrb[0].mxu0
        %883 = vmatprep.mubr.bf16.mxu0 0
        %884 = vmatmul.mubr.bf16.gmra.mrb[0].mxu0 %v529
        %v885 = vpop.f32.mrb[0].mxu0
        %v886 = vadd.f32 0.0, %v885
        %v887 = vpop.f32.mrb[0].mxu0
        %v888 = vpop.f32.mrb[0].mxu0
        %v889 = vadd.f32 0.0, %v888
        %v890 = vpop.f32.mrb[0].mxu0
        %891 = vmatprep.mubr.bf16.mxu0 0
        %892 = vmatmul.mubr.bf16.gmra.mrb[0].mxu0 %v530
        %v893 = vpop.f32.mrb[0].mxu0
        %v894 = vadd.f32 0.0, %v893
        %v895 = vpop.f32.mrb[0].mxu0
        %v896 = vpop.f32.mrb[0].mxu0
        %v897 = vadd.f32 0.0, %v896
        %v898 = vpop.f32.mrb[0].mxu0
        %899 = vdwg.mxu0
        %v900 = vpack.c.bf16 %v649, %v646
        %v901 = vpack.c.bf16 %v657, %v654
        %v902 = vpack.c.bf16 %v665, %v662
        %v903 = vpack.c.bf16 %v673, %v670
        %v904 = vpack.c.bf16 %v681, %v678
        %v905 = vpack.c.bf16 %v689, %v686
        %v906 = vpack.c.bf16 %v697, %v694
        %v907 = vpack.c.bf16 %v705, %v702
        %v908 = vpack.c.bf16 %v713, %v710
        %v909 = vpack.c.bf16 %v721, %v718
        %v910 = vpack.c.bf16 %v729, %v726
        %v911 = vpack.c.bf16 %v737, %v734
        %v912 = vpack.c.bf16 %v745, %v742
        %v913 = vpack.c.bf16 %v753, %v750
        %v914 = vpack.c.bf16 %v761, %v758
        %v915 = vpack.c.bf16 %v769, %v766
        %v916 = vpack.c.bf16 %v777, %v774
        %v917 = vpack.c.bf16 %v785, %v782
        %v918 = vpack.c.bf16 %v793, %v790
        %v919 = vpack.c.bf16 %v801, %v798
        %v920 = vpack.c.bf16 %v809, %v806
        %v921 = vpack.c.bf16 %v817, %v814
        %v922 = vpack.c.bf16 %v825, %v822
        %v923 = vpack.c.bf16 %v833, %v830
        %v924 = vpack.c.bf16 %v841, %v838
        %v925 = vpack.c.bf16 %v849, %v846
        %v926 = vpack.c.bf16 %v857, %v854
        %v927 = vpack.c.bf16 %v865, %v862
        %v928 = vpack.c.bf16 %v873, %v870
        %v929 = vpack.c.bf16 %v881, %v878
        %v930 = vpack.c.bf16 %v889, %v886
        %v931 = vpack.c.bf16 %v897, %v894
        %v932 = vld [vmem:[#allocation2] sm:$0xff]
        %v933 = vld [vmem:[#allocation2 + $0x8] sm:$0xff]
        %v934 = vld [vmem:[#allocation2 + $0x10] sm:$0xff]
        %v935 = vld [vmem:[#allocation2 + $0x18] sm:$0xff]
        %v936 = vld [vmem:[#allocation2 + $0x20] sm:$0xff]
        %v937 = vld [vmem:[#allocation2 + $0x28] sm:$0xff]
        %v938 = vld [vmem:[#allocation2 + $0x30] sm:$0xff]
        %v939 = vld [vmem:[#allocation2 + $0x38] sm:$0xff]
        %v940 = vld [vmem:[#allocation2 + $0x40] sm:$0xff]
        %v941 = vld [vmem:[#allocation2 + $0x48] sm:$0xff]
        %v942 = vld [vmem:[#allocation2 + $0x50] sm:$0xff]
        %v943 = vld [vmem:[#allocation2 + $0x58] sm:$0xff]
        %v944 = vld [vmem:[#allocation2 + $0x60] sm:$0xff]
        %v945 = vld [vmem:[#allocation2 + $0x68] sm:$0xff]
        %v946 = vld [vmem:[#allocation2 + $0x70] sm:$0xff]
        %v947 = vld [vmem:[#allocation2 + $0x78] sm:$0xff]
        %v948 = vld [vmem:[%s229] sm:$0xff]
        %v949 = vld [vmem:[%s229 + $0x8] sm:$0xff]
        %v950 = vld [vmem:[%s229 + $0x10] sm:$0xff]
        %v951 = vld [vmem:[%s229 + $0x18] sm:$0xff]
        %v952 = vld [vmem:[%s229 + $0x20] sm:$0xff]
        %v953 = vld [vmem:[%s229 + $0x28] sm:$0xff]
        %v954 = vld [vmem:[%s229 + $0x30] sm:$0xff]
        %v955 = vld [vmem:[%s229 + $0x38] sm:$0xff]
        %v956 = vld [vmem:[%s229 + $0x40] sm:$0xff]
        %v957 = vld [vmem:[%s229 + $0x48] sm:$0xff]
        %v958 = vld [vmem:[%s229 + $0x50] sm:$0xff]
        %v959 = vld [vmem:[%s229 + $0x58] sm:$0xff]
        %v960 = vld [vmem:[%s229 + $0x60] sm:$0xff]
        %v961 = vld [vmem:[%s229 + $0x68] sm:$0xff]
        %v962 = vld [vmem:[%s229 + $0x70] sm:$0xff]
        %v963 = vld [vmem:[%s229 + $0x78] sm:$0xff]
        %v964 = vld [vmem:[%s229 + $0x80] sm:$0xff]
        %v965 = vld [vmem:[%s229 + $0x88] sm:$0xff]
        %v966 = vld [vmem:[%s229 + $0x90] sm:$0xff]
        %v967 = vld [vmem:[%s229 + $0x98] sm:$0xff]
        %v968 = vld [vmem:[%s229 + $0xa0] sm:$0xff]
        %v969 = vld [vmem:[%s229 + $0xa8] sm:$0xff]
        %v970 = vld [vmem:[%s229 + $0xb0] sm:$0xff]
        %v971 = vld [vmem:[%s229 + $0xb8] sm:$0xff]
        %v972 = vld [vmem:[%s229 + $0xc0] sm:$0xff]
        %v973 = vld [vmem:[%s229 + $0xc8] sm:$0xff]
        %v974 = vld [vmem:[%s229 + $0xd0] sm:$0xff]
        %v975 = vld [vmem:[%s229 + $0xd8] sm:$0xff]
        %v976 = vld [vmem:[%s229 + $0xe0] sm:$0xff]
        %v977 = vld [vmem:[%s229 + $0xe8] sm:$0xff]
        %v978 = vld [vmem:[%s229 + $0xf0] sm:$0xff]
        %v979 = vld [vmem:[%s229 + $0xf8] sm:$0xff]
        %v1012 = vunpack.c.l.b16 %v948
        %v1013 = vunpack.c.h.b16 %v948
        %v1014 = vunpack.c.l.b16 %v949
        %v1015 = vunpack.c.h.b16 %v949
        %v1016 = vunpack.c.l.b16 %v950
        %v1017 = vunpack.c.h.b16 %v950
        %v1018 = vunpack.c.l.b16 %v951
        %v1019 = vunpack.c.h.b16 %v951
        %v1020 = vunpack.c.l.b16 %v952
        %v1021 = vunpack.c.h.b16 %v952
        %v1022 = vunpack.c.l.b16 %v953
        %v1023 = vunpack.c.h.b16 %v953
        %v1024 = vunpack.c.l.b16 %v954
        %v1025 = vunpack.c.h.b16 %v954
        %v1026 = vunpack.c.l.b16 %v955
        %v1027 = vunpack.c.h.b16 %v955
        %v1028 = vunpack.c.l.b16 %v956
        %v1029 = vunpack.c.h.b16 %v956
        %v1030 = vunpack.c.l.b16 %v957
        %v1031 = vunpack.c.h.b16 %v957
        %v1032 = vunpack.c.l.b16 %v958
        %v1033 = vunpack.c.h.b16 %v958
        %v1034 = vunpack.c.l.b16 %v959
        %v1035 = vunpack.c.h.b16 %v959
        %v1036 = vunpack.c.l.b16 %v960
        %v1037 = vunpack.c.h.b16 %v960
        %v1038 = vunpack.c.l.b16 %v961
        %v1039 = vunpack.c.h.b16 %v961
        %v1040 = vunpack.c.l.b16 %v962
        %v1041 = vunpack.c.h.b16 %v962
        %v1042 = vunpack.c.l.b16 %v963
        %v1043 = vunpack.c.h.b16 %v963
        %v1044 = vunpack.c.l.b16 %v964
        %v1045 = vunpack.c.h.b16 %v964
        %v1046 = vunpack.c.l.b16 %v965
        %v1047 = vunpack.c.h.b16 %v965
        %v1048 = vunpack.c.l.b16 %v966
        %v1049 = vunpack.c.h.b16 %v966
        %v1050 = vunpack.c.l.b16 %v967
        %v1051 = vunpack.c.h.b16 %v967
        %v1052 = vunpack.c.l.b16 %v968
        %v1053 = vunpack.c.h.b16 %v968
        %v1054 = vunpack.c.l.b16 %v969
        %v1055 = vunpack.c.h.b16 %v969
        %v1056 = vunpack.c.l.b16 %v970
        %v1057 = vunpack.c.h.b16 %v970
        %v1058 = vunpack.c.l.b16 %v971
        %v1059 = vunpack.c.h.b16 %v971
        %v1060 = vunpack.c.l.b16 %v972
        %v1061 = vunpack.c.h.b16 %v972
        %v1062 = vunpack.c.l.b16 %v973
        %v1063 = vunpack.c.h.b16 %v973
        %v1064 = vunpack.c.l.b16 %v974
        %v1065 = vunpack.c.h.b16 %v974
        %v1066 = vunpack.c.l.b16 %v975
        %v1067 = vunpack.c.h.b16 %v975
        %v1068 = vunpack.c.l.b16 %v976
        %v1069 = vunpack.c.h.b16 %v976
        %v1070 = vunpack.c.l.b16 %v977
        %v1071 = vunpack.c.h.b16 %v977
        %v1072 = vunpack.c.l.b16 %v978
        %v1073 = vunpack.c.h.b16 %v978
        %v1074 = vunpack.c.l.b16 %v979
        %v1075 = vunpack.c.h.b16 %v979
        %v1076 = vpack.c.b16 %v1016, %v1012
        %v1077 = vpack.c.b16 %v1017, %v1013
        %v1078 = vpack.c.b16 %v1018, %v1014
        %v1079 = vpack.c.b16 %v1019, %v1015
        %v1080 = vpack.c.b16 %v1024, %v1020
        %v1081 = vpack.c.b16 %v1025, %v1021
        %v1082 = vpack.c.b16 %v1026, %v1022
        %v1083 = vpack.c.b16 %v1027, %v1023
        %v1084 = vpack.c.b16 %v1032, %v1028
        %v1085 = vpack.c.b16 %v1033, %v1029
        %v1086 = vpack.c.b16 %v1034, %v1030
        %v1087 = vpack.c.b16 %v1035, %v1031
        %v1088 = vpack.c.b16 %v1040, %v1036
        %v1089 = vpack.c.b16 %v1041, %v1037
        %v1090 = vpack.c.b16 %v1042, %v1038
        %v1091 = vpack.c.b16 %v1043, %v1039
        %v1092 = vpack.c.b16 %v1048, %v1044
        %v1093 = vpack.c.b16 %v1049, %v1045
        %v1094 = vpack.c.b16 %v1050, %v1046
        %v1095 = vpack.c.b16 %v1051, %v1047
        %v1096 = vpack.c.b16 %v1056, %v1052
        %v1097 = vpack.c.b16 %v1057, %v1053
        %v1098 = vpack.c.b16 %v1058, %v1054
        %v1099 = vpack.c.b16 %v1059, %v1055
        %v1100 = vpack.c.b16 %v1064, %v1060
        %v1101 = vpack.c.b16 %v1065, %v1061
        %v1102 = vpack.c.b16 %v1066, %v1062
        %v1103 = vpack.c.b16 %v1067, %v1063
        %v1104 = vpack.c.b16 %v1072, %v1068
        %v1105 = vpack.c.b16 %v1073, %v1069
        %v1106 = vpack.c.b16 %v1074, %v1070
        %v1107 = vpack.c.b16 %v1075, %v1071
        %1140 = vmatprep.subr.bf16.mxu0 0
        %1141 = vmatpush1.bf16.msra.mxu0 %v900
        %1142 = vmatprep.subr.bf16.mxu0 0
        %1143 = vmatpush1.bf16.msra.mxu0 %v901
        %1144 = vmatprep.subr.bf16.mxu0 0
        %1145 = vmatpush1.bf16.msra.mxu0 %v902
        %1146 = vmatprep.subr.bf16.mxu0 0
        %1147 = vmatpush1.bf16.msra.mxu0 %v903
        %1148 = vmatprep.subr.bf16.mxu0 0
        %1149 = vmatpush1.bf16.msra.mxu0 %v904
        %1150 = vmatprep.subr.bf16.mxu0 0
        %1151 = vmatpush1.bf16.msra.mxu0 %v905
        %1152 = vmatprep.subr.bf16.mxu0 0
        %1153 = vmatpush1.bf16.msra.mxu0 %v906
        %1154 = vmatprep.subr.bf16.mxu0 0
        %1155 = vmatpush1.bf16.msra.mxu0 %v907
        %1156 = vmatprep.subr.bf16.mxu0 0
        %1157 = vmatpush1.bf16.msra.mxu0 %v908
        %1158 = vmatprep.subr.bf16.mxu0 0
        %1159 = vmatpush1.bf16.msra.mxu0 %v909
        %1160 = vmatprep.subr.bf16.mxu0 0
        %1161 = vmatpush1.bf16.msra.mxu0 %v910
        %1162 = vmatprep.subr.bf16.mxu0 0
        %1163 = vmatpush1.bf16.msra.mxu0 %v911
        %1164 = vmatprep.subr.bf16.mxu0 0
        %1165 = vmatpush1.bf16.msra.mxu0 %v912
        %1166 = vmatprep.subr.bf16.mxu0 0
        %1167 = vmatpush1.bf16.msra.mxu0 %v913
        %1168 = vmatprep.subr.bf16.mxu0 0
        %1169 = vmatpush1.bf16.msra.mxu0 %v914
        %1170 = vmatprep.subr.bf16.mxu0 0
        %1171 = vmatpush1.bf16.msra.mxu0 %v915
        %1172 = vmatprep.mubr.bf16.mxu0 %v1077
        %1173 = vmatmul.mubr.bf16.gmra.mrb[0].mxu0 %v1076
        %v1174 = vpop.f32.mrb[0].mxu0
        %v1175 = vadd.f32 0.0, %v1174
        %v1176 = vpop.f32.mrb[0].mxu0
        %v1177 = vpop.f32.mrb[0].mxu0
        %v1178 = vadd.f32 0.0, %v1177
        %v1179 = vpop.f32.mrb[0].mxu0
        %1180 = vmatprep.mubr.bf16.mxu0 %v1081
        %1181 = vmatmul.mubr.bf16.gmra.mrb[0].mxu0 %v1080
        %v1182 = vpop.f32.mrb[0].mxu0
        %v1183 = vadd.f32 0.0, %v1182
        %v1184 = vpop.f32.mrb[0].mxu0
        %v1185 = vpop.f32.mrb[0].mxu0
        %v1186 = vadd.f32 0.0, %v1185
        %v1187 = vpop.f32.mrb[0].mxu0
        %1188 = vmatprep.mubr.bf16.mxu0 %v1085
        %1189 = vmatmul.mubr.bf16.gmra.mrb[0].mxu0 %v1084
        %v1190 = vpop.f32.mrb[0].mxu0
        %v1191 = vadd.f32 0.0, %v1190
        %v1192 = vpop.f32.mrb[0].mxu0
        %v1193 = vpop.f32.mrb[0].mxu0
        %v1194 = vadd.f32 0.0, %v1193
        %v1195 = vpop.f32.mrb[0].mxu0
        %1196 = vmatprep.mubr.bf16.mxu0 %v1089
        %1197 = vmatmul.mubr.bf16.gmra.mrb[0].mxu0 %v1088
        %v1198 = vpop.f32.mrb[0].mxu0
        %v1199 = vadd.f32 0.0, %v1198
        %v1200 = vpop.f32.mrb[0].mxu0
        %v1201 = vpop.f32.mrb[0].mxu0
        %v1202 = vadd.f32 0.0, %v1201
        %v1203 = vpop.f32.mrb[0].mxu0
        %1204 = vmatprep.mubr.bf16.mxu0 %v1093
        %1205 = vmatmul.mubr.bf16.gmra.mrb[0].mxu0 %v1092
        %v1206 = vpop.f32.mrb[0].mxu0
        %v1207 = vadd.f32 0.0, %v1206
        %v1208 = vpop.f32.mrb[0].mxu0
        %v1209 = vpop.f32.mrb[0].mxu0
        %v1210 = vadd.f32 0.0, %v1209
        %v1211 = vpop.f32.mrb[0].mxu0
        %1212 = vmatprep.mubr.bf16.mxu0 %v1097
        %1213 = vmatmul.mubr.bf16.gmra.mrb[0].mxu0 %v1096
        %v1214 = vpop.f32.mrb[0].mxu0
        %v1215 = vadd.f32 0.0, %v1214
        %v1216 = vpop.f32.mrb[0].mxu0
        %v1217 = vpop.f32.mrb[0].mxu0
        %v1218 = vadd.f32 0.0, %v1217
        %v1219 = vpop.f32.mrb[0].mxu0
        %1220 = vmatprep.mubr.bf16.mxu0 %v1101
        %1221 = vmatmul.mubr.bf16.gmra.mrb[0].mxu0 %v1100
        %v1222 = vpop.f32.mrb[0].mxu0
        %v1223 = vadd.f32 0.0, %v1222
        %v1224 = vpop.f32.mrb[0].mxu0
        %v1225 = vpop.f32.mrb[0].mxu0
        %v1226 = vadd.f32 0.0, %v1225
        %v1227 = vpop.f32.mrb[0].mxu0
        %1228 = vmatprep.mubr.bf16.mxu0 %v1105
        %1229 = vmatmul.mubr.bf16.gmra.mrb[0].mxu0 %v1104
        %v1230 = vpop.f32.mrb[0].mxu0
        %v1231 = vadd.f32 0.0, %v1230
        %v1232 = vpop.f32.mrb[0].mxu0
        %v1233 = vpop.f32.mrb[0].mxu0
        %v1234 = vadd.f32 0.0, %v1233
        %v1235 = vpop.f32.mrb[0].mxu0
        %1236 = vdwg.mxu0
        %1237 = vmatprep.subr.bf16.mxu0 0
        %1238 = vmatpush1.bf16.msra.mxu0 %v916
        %1239 = vmatprep.subr.bf16.mxu0 0
        %1240 = vmatpush1.bf16.msra.mxu0 %v917
        %1241 = vmatprep.subr.bf16.mxu0 0
        %1242 = vmatpush1.bf16.msra.mxu0 %v918
        %1243 = vmatprep.subr.bf16.mxu0 0
        %1244 = vmatpush1.bf16.msra.mxu0 %v919
        %1245 = vmatprep.subr.bf16.mxu0 0
        %1246 = vmatpush1.bf16.msra.mxu0 %v920
        %1247 = vmatprep.subr.bf16.mxu0 0
        %1248 = vmatpush1.bf16.msra.mxu0 %v921
        %1249 = vmatprep.subr.bf16.mxu0 0
        %1250 = vmatpush1.bf16.msra.mxu0 %v922
        %1251 = vmatprep.subr.bf16.mxu0 0
        %1252 = vmatpush1.bf16.msra.mxu0 %v923
        %1253 = vmatprep.subr.bf16.mxu0 0
        %1254 = vmatpush1.bf16.msra.mxu0 %v924
        %1255 = vmatprep.subr.bf16.mxu0 0
        %1256 = vmatpush1.bf16.msra.mxu0 %v925
        %1257 = vmatprep.subr.bf16.mxu0 0
        %1258 = vmatpush1.bf16.msra.mxu0 %v926
        %1259 = vmatprep.subr.bf16.mxu0 0
        %1260 = vmatpush1.bf16.msra.mxu0 %v927
        %1261 = vmatprep.subr.bf16.mxu0 0
        %1262 = vmatpush1.bf16.msra.mxu0 %v928
        %1263 = vmatprep.subr.bf16.mxu0 0
        %1264 = vmatpush1.bf16.msra.mxu0 %v929
        %1265 = vmatprep.subr.bf16.mxu0 0
        %1266 = vmatpush1.bf16.msra.mxu0 %v930
        %1267 = vmatprep.subr.bf16.mxu0 0
        %1268 = vmatpush1.bf16.msra.mxu0 %v931
        %1269 = vmatprep.mubr.bf16.mxu0 %v1079
        %1270 = vmatmul.mubr.bf16.gmra.mrb[0].mxu0 %v1078
        %v1271 = vpop.f32.mrb[0].mxu0
        %v1272 = vadd.f32 %v1175, %v1271
        %v1273 = vpop.f32.mrb[0].mxu0
        %v1274 = vpop.f32.mrb[0].mxu0
        %v1275 = vadd.f32 %v1178, %v1274
        %v1276 = vpop.f32.mrb[0].mxu0
        %1277 = vmatprep.mubr.bf16.mxu0 %v1083
        %1278 = vmatmul.mubr.bf16.gmra.mrb[0].mxu0 %v1082
        %v1279 = vpop.f32.mrb[0].mxu0
        %v1280 = vadd.f32 %v1183, %v1279
        %v1281 = vpop.f32.mrb[0].mxu0
        %v1282 = vpop.f32.mrb[0].mxu0
        %v1283 = vadd.f32 %v1186, %v1282
        %v1284 = vpop.f32.mrb[0].mxu0
        %1285 = vmatprep.mubr.bf16.mxu0 %v1087
        %1286 = vmatmul.mubr.bf16.gmra.mrb[0].mxu0 %v1086
        %v1287 = vpop.f32.mrb[0].mxu0
        %v1288 = vadd.f32 %v1191, %v1287
        %v1289 = vpop.f32.mrb[0].mxu0
        %v1290 = vpop.f32.mrb[0].mxu0
        %v1291 = vadd.f32 %v1194, %v1290
        %v1292 = vpop.f32.mrb[0].mxu0
        %1293 = vmatprep.mubr.bf16.mxu0 %v1091
        %1294 = vmatmul.mubr.bf16.gmra.mrb[0].mxu0 %v1090
        %v1295 = vpop.f32.mrb[0].mxu0
        %v1296 = vadd.f32 %v1199, %v1295
        %v1297 = vpop.f32.mrb[0].mxu0
        %v1298 = vpop.f32.mrb[0].mxu0
        %v1299 = vadd.f32 %v1202, %v1298
        %v1300 = vpop.f32.mrb[0].mxu0
        %1301 = vmatprep.mubr.bf16.mxu0 %v1095
        %1302 = vmatmul.mubr.bf16.gmra.mrb[0].mxu0 %v1094
        %v1303 = vpop.f32.mrb[0].mxu0
        %v1304 = vadd.f32 %v1207, %v1303
        %v1305 = vpop.f32.mrb[0].mxu0
        %v1306 = vpop.f32.mrb[0].mxu0
        %v1307 = vadd.f32 %v1210, %v1306
        %v1308 = vpop.f32.mrb[0].mxu0
        %1309 = vmatprep.mubr.bf16.mxu0 %v1099
        %1310 = vmatmul.mubr.bf16.gmra.mrb[0].mxu0 %v1098
        %v1311 = vpop.f32.mrb[0].mxu0
        %v1312 = vadd.f32 %v1215, %v1311
        %v1313 = vpop.f32.mrb[0].mxu0
        %v1314 = vpop.f32.mrb[0].mxu0
        %v1315 = vadd.f32 %v1218, %v1314
        %v1316 = vpop.f32.mrb[0].mxu0
        %1317 = vmatprep.mubr.bf16.mxu0 %v1103
        %1318 = vmatmul.mubr.bf16.gmra.mrb[0].mxu0 %v1102
        %v1319 = vpop.f32.mrb[0].mxu0
        %v1320 = vadd.f32 %v1223, %v1319
        %v1321 = vpop.f32.mrb[0].mxu0
        %v1322 = vpop.f32.mrb[0].mxu0
        %v1323 = vadd.f32 %v1226, %v1322
        %v1324 = vpop.f32.mrb[0].mxu0
        %1325 = vmatprep.mubr.bf16.mxu0 %v1107
        %1326 = vmatmul.mubr.bf16.gmra.mrb[0].mxu0 %v1106
        %v1327 = vpop.f32.mrb[0].mxu0
        %v1328 = vadd.f32 %v1231, %v1327
        %v1329 = vpop.f32.mrb[0].mxu0
        %v1330 = vpop.f32.mrb[0].mxu0
        %v1331 = vadd.f32 %v1234, %v1330
        %v1332 = vpop.f32.mrb[0].mxu0
        %1333 = vdwg.mxu0
        %v1334 = vadd.f32 %v932, %v1272
        %v1335 = vadd.f32 %v933, %v1275
        %v1336 = vadd.f32 %v934, %v1280
        %v1337 = vadd.f32 %v935, %v1283
        %v1338 = vadd.f32 %v936, %v1288
        %v1339 = vadd.f32 %v937, %v1291
        %v1340 = vadd.f32 %v938, %v1296
        %v1341 = vadd.f32 %v939, %v1299
        %v1342 = vadd.f32 %v940, %v1304
        %v1343 = vadd.f32 %v941, %v1307
        %v1344 = vadd.f32 %v942, %v1312
        %v1345 = vadd.f32 %v943, %v1315
        %v1346 = vadd.f32 %v944, %v1320
        %v1347 = vadd.f32 %v945, %v1323
        %v1348 = vadd.f32 %v946, %v1328
        %v1349 = vadd.f32 %v947, %v1331
        %1350 = vst [vmem:[#allocation2] sm:$0xff] %v1334
        %1351 = vst [vmem:[#allocation2 + $0x8] sm:$0xff] %v1335
        %1352 = vst [vmem:[#allocation2 + $0x10] sm:$0xff] %v1336
        %1353 = vst [vmem:[#allocation2 + $0x18] sm:$0xff] %v1337
        %1354 = vst [vmem:[#allocation2 + $0x20] sm:$0xff] %v1338
        %1355 = vst [vmem:[#allocation2 + $0x28] sm:$0xff] %v1339
        %1356 = vst [vmem:[#allocation2 + $0x30] sm:$0xff] %v1340
        %1357 = vst [vmem:[#allocation2 + $0x38] sm:$0xff] %v1341
        %1358 = vst [vmem:[#allocation2 + $0x40] sm:$0xff] %v1342
        %1359 = vst [vmem:[#allocation2 + $0x48] sm:$0xff] %v1343
        %1360 = vst [vmem:[#allocation2 + $0x50] sm:$0xff] %v1344
        %1361 = vst [vmem:[#allocation2 + $0x58] sm:$0xff] %v1345
        %1362 = vst [vmem:[#allocation2 + $0x60] sm:$0xff] %v1346
        %1363 = vst [vmem:[#allocation2 + $0x68] sm:$0xff] %v1347
        %1364 = vst [vmem:[#allocation2 + $0x70] sm:$0xff] %v1348
        %1365 = vst [vmem:[#allocation2 + $0x78] sm:$0xff] %v1349
        // Predicated region
        $region53: #{tpu_custom_call.1} parent=35 // pred_check
          %p1366 = pneg %p266
        $region54: #{tpu_custom_call.1} parent=35 // pred_check_branch
          %1368 = sbr.rel (%p1366) target = $region56
        $region55: #{tpu_custom_call.1} parent=35 // pred_region
          %v1369 = vld [vmem:[#allocation2] sm:$0xff]
          %v1370 = vld [vmem:[#allocation2 + $0x8] sm:$0xff]
          %v1371 = vld [vmem:[#allocation2 + $0x10] sm:$0xff]
          %v1372 = vld [vmem:[#allocation2 + $0x18] sm:$0xff]
          %v1373 = vld [vmem:[#allocation2 + $0x20] sm:$0xff]
          %v1374 = vld [vmem:[#allocation2 + $0x28] sm:$0xff]
          %v1375 = vld [vmem:[#allocation2 + $0x30] sm:$0xff]
          %v1376 = vld [vmem:[#allocation2 + $0x38] sm:$0xff]
          %v1377 = vld [vmem:[#allocation2 + $0x40] sm:$0xff]
          %v1378 = vld [vmem:[#allocation2 + $0x48] sm:$0xff]
          %v1379 = vld [vmem:[#allocation2 + $0x50] sm:$0xff]
          %v1380 = vld [vmem:[#allocation2 + $0x58] sm:$0xff]
          %v1381 = vld [vmem:[#allocation2 + $0x60] sm:$0xff]
          %v1382 = vld [vmem:[#allocation2 + $0x68] sm:$0xff]
          %v1383 = vld [vmem:[#allocation2 + $0x70] sm:$0xff]
          %v1384 = vld [vmem:[#allocation2 + $0x78] sm:$0xff]
          %v1385 = vld [vmem:[%s3] sm:$0x1]
          %v1387 = vlaneseq
          %v1388 = vshrl.u32 %v1387, 7
          %v1389 = vsub.s32 0, %v1388
          %v1390 = vrot.slane %v1385, %v1389
          %v1392 = vadd.f32 %v1369, %v1390
          %v1393 = vadd.f32 %v1370, %v1390
          %v1394 = vadd.f32 %v1371, %v1390
          %v1395 = vadd.f32 %v1372, %v1390
          %v1396 = vadd.f32 %v1373, %v1390
          %v1397 = vadd.f32 %v1374, %v1390
          %v1398 = vadd.f32 %v1375, %v1390
          %v1399 = vadd.f32 %v1376, %v1390
          %v1400 = vadd.f32 %v1377, %v1390
          %v1401 = vadd.f32 %v1378, %v1390
          %v1402 = vadd.f32 %v1379, %v1390
          %v1403 = vadd.f32 %v1380, %v1390
          %v1404 = vadd.f32 %v1381, %v1390
          %v1405 = vadd.f32 %v1382, %v1390
          %v1406 = vadd.f32 %v1383, %v1390
          %v1407 = vadd.f32 %v1384, %v1390
          %v1408 = vmax.f32 %v1392, 0.0
          %v1409 = vmax.f32 %v1393, 0.0
          %v1410 = vmax.f32 %v1394, 0.0
          %v1411 = vmax.f32 %v1395, 0.0
          %v1412 = vmax.f32 %v1396, 0.0
          %v1413 = vmax.f32 %v1397, 0.0
          %v1414 = vmax.f32 %v1398, 0.0
          %v1415 = vmax.f32 %v1399, 0.0
          %v1416 = vmax.f32 %v1400, 0.0
          %v1417 = vmax.f32 %v1401, 0.0
          %v1418 = vmax.f32 %v1402, 0.0
          %v1419 = vmax.f32 %v1403, 0.0
          %v1420 = vmax.f32 %v1404, 0.0
          %v1421 = vmax.f32 %v1405, 0.0
          %v1422 = vmax.f32 %v1406, 0.0
          %v1423 = vmax.f32 %v1407, 0.0
          %v1424 = vpack.c.bf16 %v1409, %v1408
          %v1425 = vpack.c.bf16 %v1411, %v1410
          %v1426 = vpack.c.bf16 %v1413, %v1412
          %v1427 = vpack.c.bf16 %v1415, %v1414
          %v1428 = vpack.c.bf16 %v1417, %v1416
          %v1429 = vpack.c.bf16 %v1419, %v1418
          %v1430 = vpack.c.bf16 %v1421, %v1420
          %v1431 = vpack.c.bf16 %v1423, %v1422
          %v1440 = vunpack.c.l.b16 %v1424
          %v1441 = vunpack.c.h.b16 %v1424
          %v1442 = vunpack.c.l.b16 %v1425
          %v1443 = vunpack.c.h.b16 %v1425
          %v1444 = vunpack.c.l.b16 %v1426
          %v1445 = vunpack.c.h.b16 %v1426
          %v1446 = vunpack.c.l.b16 %v1427
          %v1447 = vunpack.c.h.b16 %v1427
          %v1448 = vunpack.c.l.b16 %v1428
          %v1449 = vunpack.c.h.b16 %v1428
          %v1450 = vunpack.c.l.b16 %v1429
          %v1451 = vunpack.c.h.b16 %v1429
          %v1452 = vunpack.c.l.b16 %v1430
          %v1453 = vunpack.c.h.b16 %v1430
          %v1454 = vunpack.c.l.b16 %v1431
          %v1455 = vunpack.c.h.b16 %v1431
          %v1456 = vpack.c.b16 %v1440, %v1440
          %v1457 = vpack.c.b16 %v1441, %v1441
          %v1458 = vpack.c.b16 %v1442, %v1442
          %v1459 = vpack.c.b16 %v1443, %v1443
          %v1460 = vpack.c.b16 %v1444, %v1444
          %v1461 = vpack.c.b16 %v1445, %v1445
          %v1462 = vpack.c.b16 %v1446, %v1446
          %v1463 = vpack.c.b16 %v1447, %v1447
          %v1464 = vpack.c.b16 %v1448, %v1448
          %v1465 = vpack.c.b16 %v1449, %v1449
          %v1466 = vpack.c.b16 %v1450, %v1450
          %v1467 = vpack.c.b16 %v1451, %v1451
          %v1468 = vpack.c.b16 %v1452, %v1452
          %v1469 = vpack.c.b16 %v1453, %v1453
          %v1470 = vpack.c.b16 %v1454, %v1454
          %v1471 = vpack.c.b16 %v1455, %v1455
          %1488 = vst [vmem:[%s261] sm:$0xf] %v1456
          %1489 = vst [vmem:[%s261 + $0x4] sm:$0xf] %v1457
          %1490 = vst [vmem:[%s261 + $0x8] sm:$0xf] %v1458
          %1491 = vst [vmem:[%s261 + $0xc] sm:$0xf] %v1459
          %1492 = vst [vmem:[%s261 + $0x10] sm:$0xf] %v1460
          %1493 = vst [vmem:[%s261 + $0x14] sm:$0xf] %v1461
          %1494 = vst [vmem:[%s261 + $0x18] sm:$0xf] %v1462
          %1495 = vst [vmem:[%s261 + $0x1c] sm:$0xf] %v1463
          %1496 = vst [vmem:[%s261 + $0x20] sm:$0xf] %v1464
          %1497 = vst [vmem:[%s261 + $0x24] sm:$0xf] %v1465
          %1498 = vst [vmem:[%s261 + $0x28] sm:$0xf] %v1466
          %1499 = vst [vmem:[%s261 + $0x2c] sm:$0xf] %v1467
          %1500 = vst [vmem:[%s261 + $0x30] sm:$0xf] %v1468
          %1501 = vst [vmem:[%s261 + $0x34] sm:$0xf] %v1469
          %1502 = vst [vmem:[%s261 + $0x38] sm:$0xf] %v1470
          %1503 = vst [vmem:[%s261 + $0x3c] sm:$0xf] %v1471
        $region56: #{tpu_custom_call.1} parent=35 // pred_fallthru
          _
        %s1504 = sand.u32 %s133, 1
        %s1505 = scalar_lea.sflag [#allocation5], %s1504
        %s1506 = sand.u32 %s133, 1
        %s1507 = smul.addr %s1506, 64
        %s1508 = scalar_lea.vmem [#allocation9], %s1507
        // Predicated region
        $region57: #{tpu_custom_call.1} parent=35 // pred_check
          %p1509 = pneg %p143
        $region58: #{tpu_custom_call.1} parent=35 // pred_check_branch
          %1511 = sbr.rel (%p1509) target = $region60
        $region59: #{tpu_custom_call.1} parent=35 // pred_region
          %s1512 = smul.u32 16, %s26
          %s1514 = ssub.s32 1024, 1024
          %1515 = vsyncadd %s1505, %s1514
          %s1516 = smul.addr %s1512, 64
          %s1517 = scalar_lea.hbm %s4, %s1516
          %s1518 = sshll.u32 %s1508, 4
          %s1519 = int_to_ptr.vmem [resolvable:$true] %s1518
          %1524 = dma.vmem_to_hbm [thread:$0]  %s1519, 1024, %s1517, %s1505, 64, 64, 4
        $region60: #{tpu_custom_call.1} parent=35 // pred_fallthru
          _
      $region36: #{tpu_custom_call.1} parent=5 // pred_fallthru
        _
      %p1525 = scmp.le.s32.totalorder 2, %s17
      // Predicated region
      $region61: #{tpu_custom_call.1} parent=5 // pred_check
        %p1526 = pneg %p1525
      $region62: #{tpu_custom_call.1} parent=5 // pred_check_branch
        %1528 = sbr.rel (%p1526) target = $region64
      $region63: #{tpu_custom_call.1} parent=5 // pred_region
        %s1529 = ssub.s32 %s17, 2
        // Predicated region
        $region65: #{tpu_custom_call.1} parent=63 // pred_check
          %p1530 = pneg %p149
        $region66: #{tpu_custom_call.1} parent=63 // pred_check_branch
          %1532 = sbr.rel (%p1530) target = $region68
        $region67: #{tpu_custom_call.1} parent=63 // pred_region
          %s1533 = sand.u32 %s134, 1
          %s1534 = scalar_lea.sflag [#allocation5], %s1533
          %s1535 = sand.u32 %s134, 1
          %s1536 = smul.addr %s1535, 64
          %s1537 = scalar_lea.vmem [#allocation9], %s1536
          %1538 = dma.done %s1534, 1024
        $region68: #{tpu_custom_call.1} parent=63 // pred_fallthru
          _
      $region64: #{tpu_custom_call.1} parent=5 // pred_fallthru
        _
    $region6: #{tpu_custom_call.1} parent=1 // loop_footer
      %s21 = sadd.s32 1, %s17
    $region7: #{tpu_custom_call.1} parent=1 // loop_footer_branch
      %16 = sbr.rel target = $region3
    $region8: #{tpu_custom_call.1} parent=1 // loop_exit
      _
    %1539 = vsyncpa [#allocation4], 1
    %s1540 = scalar_lea.sflag [#allocation4], 1
    %1541 = vsyncpa %s1540, 1
    %1542 = vsyncpa [#allocation7], 1
    %1543 = vsyncpa [#allocation5], 1
    %s1544 = scalar_lea.sflag [#allocation5], 1
    %1545 = vsyncpa %s1544, 1

</llo_original>
